<compile_context>
chip_gen: v7x
topology: tpu7x:2x2x1
jax: 0.10.0
libtpu: 0.0.40
codegen_flags: <defaults>
</compile_context>

<pallas_src>
import numpy as np
import jax
import jax.numpy as jnp
from jax import lax
from jax.experimental import pallas as pl
from jax.experimental.pallas import tpu as pltpu


# ----------------------------------------------------------------------------
# Module constants (mirror cfg.MODEL.NUM_JOINTS / NUM_LIMBS and the COCO rules)
# ----------------------------------------------------------------------------
NUM_JOINTS = 14
NUM_LIMBS = 14

COCO_PERSON_KEYPOINT_NAMES = (
    'left_shoulder', 'right_shoulder', 'left_elbow', 'right_elbow',
    'left_wrist', 'right_wrist', 'left_hip', 'right_hip', 'left_knee',
    'right_knee', 'left_ankle', 'right_ankle', 'head', 'neck')

KEYPOINT_CONNECTION_RULES = [
    ('head', 'neck'), ('right_shoulder', 'neck'), ('left_shoulder', 'neck'),
    ('left_shoulder', 'left_elbow'), ('right_shoulder', 'right_elbow'),
    ('left_elbow', 'left_wrist'), ('right_elbow', 'right_wrist'),
    ('left_hip', 'right_hip'), ('left_hip', 'left_knee'),
    ('right_hip', 'right_knee'), ('left_knee', 'left_ankle'),
    ('right_knee', 'right_ankle'), ('left_shoulder', 'left_hip'),
    ('right_shoulder', 'right_hip')]


def generate_commonsense_knowledge_graph():
    name_to_idx = {n: i for i, n in enumerate(COCO_PERSON_KEYPOINT_NAMES)}
    m = np.zeros((NUM_LIMBS, NUM_JOINTS), dtype=np.float32)
    for i, (a, b) in enumerate(KEYPOINT_CONNECTION_RULES):
        m[i, name_to_idx[a]] = 1.0
        m[i, name_to_idx[b]] = 1.0
    return m


# ----------------------------------------------------------------------------
# Pallas kernel
#   grid = (ws_p // tile_k,)   -- single "arbitrary" reduction axis
#
#   kt_ref : (NUM_LIMBS, ws_p)  bf16, constant block index -> fetched once
#   w1_ref : (tile_k,   ws_p)   bf16, row block k of Linear1 weight  (out,in)
#   b1_ref : (1, tile_k)        f32,  slice k of Linear1 bias
#   w2_ref : (ws_p, tile_k)     bf16, column slab k of Linear2 weight (out,in)
#   b2_ref : (1, ws_p)          f32,  constant block index -> fetched once
#   out_ref: (NUM_LIMBS, ws_p)  f32,  constant block index -> resident acc
# ----------------------------------------------------------------------------
def kt_machine_kernel(kt_ref, w1_ref, b1_ref, w2_ref, b2_ref, out_ref):
    k = pl.program_id(0)

    @pl.when(k == 0)
    def _():
        # Output buffer doubles as the f32 accumulator (resident across k).
        out_ref[...] = jnp.broadcast_to(b2_ref[...], out_ref.shape)

    # Linear1 hidden tile (f32 MXU accumulation):
    #   h1[:, k_tile] = kt @ W1[k_tile, :]^T + b1[k_tile]
    # (contraction over the LAST axis of both operands -> no transpose needed)
    h1 = lax.dot_general(
        kt_ref[...], w1_ref[...],
        dimension_numbers=(((1,), (1,)), ((), ())),
        preferred_element_type=jnp.float32) + b1_ref[...]
    # LeakyReLU(0.02) — per hidden column, so tiling the hidden dim is exact.
    h1 = jnp.where(h1 > 0, h1, 0.02 * h1)

    # Linear2 partial: out += h1[:, k_tile] @ W2[:, k_tile]^T
    out_ref[...] += lax.dot_general(
        h1.astype(jnp.bfloat16), w2_ref[...],
        dimension_numbers=(((1,), (1,)), ((), ())),
        preferred_element_type=jnp.float32)


# ----------------------------------------------------------------------------
# VMEM budgeting / tile selection
# ----------------------------------------------------------------------------
def _vmem_capacity_bytes():
    try:
        return int(pltpu.get_tpu_info().vmem_capacity_bytes)
    except Exception:
        return 64 * 1024 * 1024            # conservative (v7x per-TC)


def _pick_tile_k(ws_p, weight_budget_bytes):
    """Largest tile_k (multiple of 128, divides ws_p) such that the
    double-buffered bf16 W1 (tile_k, ws_p) + W2 (ws_p, tile_k) blocks fit:
        2 * 2 * tile_k * ws_p * 2 B  =  8 * tile_k * ws_p  <=  budget
    """
    max_tk = weight_budget_bytes // (8 * ws_p)
    max_tk = (max_tk // 128) * 128
    if max_tk >= ws_p:
        return ws_p                        # single-shot fast path
    t = max(max_tk, 128)
    while t >= 128:
        if ws_p % t == 0:
            return t
        t -= 128
    return 128                             # 128 always divides ws_p


# ----------------------------------------------------------------------------
# Wrapper
# ----------------------------------------------------------------------------
def kt_machine_forward(weights, params):
    """weights: (n_out, n_in, h, w) with n_out == NUM_JOINTS."""
    n_out, n_in, h, w = weights.shape
    assert n_out == NUM_JOINTS
    ws = n_in * h * w
    ml, rml, w1, b1, w2, b2 = params

    x2d = weights.reshape(n_out, ws).astype(jnp.float32)

    # Tiny graph matmul hoisted to the wrapper (14x14 @ 14xws — negligible).
    kt = (ml * rml) @ x2d                                  # (NUM_LIMBS, ws)

    # Pad feature dim to a multiple of 128 once so every block is lane-dense.
    ws_p = ((ws + 127) // 128) * 128
    if ws_p != ws:
        pad = ws_p - ws
        kt = jnp.pad(kt, ((0, 0), (0, pad)))
        w1 = jnp.pad(w1, ((0, pad), (0, pad)))
        w2 = jnp.pad(w2, ((0, pad), (0, pad)))
        b1 = jnp.pad(b1, ((0, pad),))
        b2 = jnp.pad(b2, ((0, pad),))

    # bf16 streams for the HBM-bound operands; biases / accumulation stay f32.
    kt_bf = kt.astype(jnp.bfloat16)
    w1_bf = w1.astype(jnp.bfloat16)
    w2_bf = w2.astype(jnp.bfloat16)
    b1_f = b1.reshape(1, ws_p).astype(jnp.float32)
    b2_f = b2.reshape(1, ws_p).astype(jnp.float32)

    # Per-generation VMEM budget (safe on v7x's 64 MiB, uses v5e/v6e headroom).
    vmem_cap = _vmem_capacity_bytes()
    vmem_limit = min(vmem_cap - 8 * 1024 * 1024, 100 * 1024 * 1024)
    weight_budget = max(16 * 1024 * 1024, vmem_limit - 16 * 1024 * 1024)

    tile_k = _pick_tile_k(ws_p, weight_budget)
    grid = (ws_p // tile_k,)

    cost = pl.CostEstimate(
        flops=4 * NUM_LIMBS * ws_p * ws_p,                 # Linear1 + Linear2
        transcendentals=0,
        bytes_accessed=(2 * ws_p * ws_p * 2                # W1 + W2 (bf16, once)
                        + NUM_LIMBS * ws_p * 2             # kt (bf16)
                        + 2 * ws_p * 4                     # b1 + b2 (f32)
                        + NUM_LIMBS * ws_p * 4))           # out (f32)

    out2d = pl.pallas_call(
        kt_machine_kernel,
        out_shape=jax.ShapeDtypeStruct((NUM_LIMBS, ws_p), jnp.float32),
        grid_spec=pltpu.PrefetchScalarGridSpec(
            num_scalar_prefetch=0,
            grid=grid,
            in_specs=[
                pl.BlockSpec((NUM_LIMBS, ws_p), lambda k: (0, 0)),  # kt (resident)
                pl.BlockSpec((tile_k, ws_p),    lambda k: (k, 0)),  # W1 row block
                pl.BlockSpec((1, tile_k),       lambda k: (0, k)),  # b1 slice
                pl.BlockSpec((ws_p, tile_k),    lambda k: (0, k)),  # W2 column slab
                pl.BlockSpec((1, ws_p),         lambda k: (0, 0)),  # b2 (resident)
            ],
            out_specs=pl.BlockSpec((NUM_LIMBS, ws_p), lambda k: (0, 0)),
        ),
        compiler_params=pltpu.CompilerParams(
            dimension_semantics=("arbitrary",),            # reduction axis
            vmem_limit_bytes=int(vmem_limit)),
        cost_estimate=cost,
    )(kt_bf, w1_bf, b1_f, w2_bf, b2_f)

    if ws_p != ws:
        out2d = out2d[:, :ws]
    return out2d.reshape(NUM_LIMBS, n_in, h, w)


# ----------------------------------------------------------------------------
# Deterministic parameter init (mirrors __init__ / initialize_module_params)
# ----------------------------------------------------------------------------
def init_params(key, weight_size):
    k_ml, k_w1, k_w2 = jax.random.split(key, 3)
    # matrix_limb: torch.randn (name has no 'weight'/'bias' -> untouched by init)
    matrix_limb = jax.random.normal(k_ml, (NUM_LIMBS, NUM_JOINTS), jnp.float32)
    # real_matrix_limb: fixed 0/1 commonsense graph (non-trainable)
    real_matrix_limb = jnp.asarray(generate_commonsense_knowledge_graph())
    # Linear weights: kaiming_normal_(mode='fan_out', nonlinearity='relu'),
    # stored in PyTorch (out_features, in_features) layout (no transpose).
    std = float(np.sqrt(2.0 / weight_size))                # fan_out = out_features
    w1 = jax.random.normal(k_w1, (weight_size, weight_size), jnp.float32) * std
    w2 = jax.random.normal(k_w2, (weight_size, weight_size), jnp.float32) * std
    # biases -> 0
    b1 = jnp.zeros((weight_size,), jnp.float32)
    b2 = jnp.zeros((weight_size,), jnp.float32)
    return matrix_limb, real_matrix_limb, w1, b1, w2, b2


def reference_forward(weights, params):
    """Pure-JAX f32 reference (semantics of the PyTorch module)."""
    n_out, n_in, h, w = weights.shape
    ws = n_in * h * w
    ml, rml, w1, b1, w2, b2 = params
    x = weights.reshape(n_out, ws)
    kt = (ml * rml) @ x
    h1 = kt @ w1.T + b1
    h1 = jnp.where(h1 > 0, h1, 0.02 * h1)                  # LeakyReLU(0.02)
    out = h1 @ w2.T + b2
    return out.reshape(NUM_LIMBS, n_in, h, w)


if __name__ == "__main__":
    key = jax.random.PRNGKey(0)
    k_param, k_in = jax.random.split(key)

    # small shapes consistent with the module: n_out must equal NUM_JOINTS
    n_out, n_in, h, w = NUM_JOINTS, 8, 8, 8
    weight_size = n_in * h * w                             # 512 -> grid (1,)

    params = init_params(k_param, weight_size)
    x = jax.random.normal(k_in, (n_out, n_in, h, w), jnp.float32)

    out = kt_machine_forward(x, params)
    out = jax.block_until_ready(out)

    ref = reference_forward(x, params)
    assert out.shape == (NUM_LIMBS, n_in, h, w)
    # bf16 weight/activation streams with f32 accumulation vs strict f32 ref.
    np.testing.assert_allclose(np.asarray(out), np.asarray(ref),
                               rtol=2e-2, atol=1e-1)

    print("KERNEL_OK")
</pallas_src>

<mosaic_0001>
module attributes {stable_mosaic.version = 11 : i64} {
  func.func @kt_machine_kernel(%arg0: i32, %arg1: memref<14x512xbf16, #tpu.memory_space<vmem>>, %arg2: memref<512x512xbf16, #tpu.memory_space<vmem>>, %arg3: memref<1x512xf32, #tpu.memory_space<vmem>>, %arg4: memref<512x512xbf16, #tpu.memory_space<vmem>>, %arg5: memref<1x512xf32, #tpu.memory_space<vmem>>, %arg6: memref<14x512xf32, #tpu.memory_space<vmem>>) attributes {dimension_semantics = [#tpu.dimension_semantics<arbitrary>], iteration_bounds = array<i64: 1>, scalar_prefetch = 0 : i64, scratch_operands = 0 : i64, tpu.core_type = #tpu.core_type<tc>, window_params = [{pipeline_mode = #tpu.pipeline_mode<synchronous>, transform_indices = @transform_0, window_bounds = array<i64: 14, 512>}, {transform_indices = @transform_1, window_bounds = array<i64: 512, 512>}, {transform_indices = @transform_2, window_bounds = array<i64: 1, 512>}, {transform_indices = @transform_3, window_bounds = array<i64: 512, 512>}, {pipeline_mode = #tpu.pipeline_mode<synchronous>, transform_indices = @transform_4, window_bounds = array<i64: 1, 512>}, {pipeline_mode = #tpu.pipeline_mode<synchronous>, transform_indices = @transform_5, window_bounds = array<i64: 14, 512>}]} {
    %c0_i32 = arith.constant 0 : i32
    %0 = arith.cmpi eq, %arg0, %c0_i32 : i32
    %1 = arith.extui %0 : i1 to i32
    %c0_i32_0 = arith.constant 0 : i32
    %2 = arith.cmpi ne, %1, %c0_i32_0 : i32
    scf.if %2 {
      %c0_15 = arith.constant 0 : index
      %c0_16 = arith.constant 0 : index
      %20 = vector.load %arg5[%c0_15, %c0_16] : memref<1x512xf32, #tpu.memory_space<vmem>>, vector<1x512xf32>
      %21 = vector.shape_cast %20 : vector<1x512xf32> to vector<1x512xf32>
      %22 = vector.broadcast %21 : vector<1x512xf32> to vector<14x512xf32>
      %c0_17 = arith.constant 0 : index
      %c0_18 = arith.constant 0 : index
      %23 = vector.load %arg6[%c0_17, %c0_18] : memref<14x512xf32, #tpu.memory_space<vmem>>, vector<14x512xf32>
      tpu.vector_store %arg6[%c0_17, %c0_18], %22 {strides = array<i32>} : memref<14x512xf32, #tpu.memory_space<vmem>>, vector<14x512xf32>,
    } else {
    }
    %c0 = arith.constant 0 : index
    %c0_1 = arith.constant 0 : index
    %3 = vector.load %arg1[%c0, %c0_1] : memref<14x512xbf16, #tpu.memory_space<vmem>>, vector<14x512xbf16>
    %c0_2 = arith.constant 0 : index
    %c0_3 = arith.constant 0 : index
    %4 = vector.load %arg2[%c0_2, %c0_3] : memref<512x512xbf16, #tpu.memory_space<vmem>>, vector<512x512xbf16>
    %cst = arith.constant dense<0.000000e+00> : vector<14x512xf32>
    %5 = tpu.matmul %3, %4, %cst {dimension_numbers = #tpu.dot_dimension_numbers<[1], [1], [0], [0], [0, 0, 1, 0], [], []>} : vector<14x512xbf16>, vector<512x512xbf16>, vector<14x512xf32> -> vector<14x512xf32>
    %c0_4 = arith.constant 0 : index
    %c0_5 = arith.constant 0 : index
    %6 = vector.load %arg3[%c0_4, %c0_5] : memref<1x512xf32, #tpu.memory_space<vmem>>, vector<1x512xf32>
    %7 = vector.broadcast %6 : vector<1x512xf32> to vector<14x512xf32>
    %8 = arith.addf %5, %7 : vector<14x512xf32>
    %cst_6 = arith.constant 0.000000e+00 : f32
    %9 = vector.broadcast %cst_6 : f32 to vector<14x512xf32>
    %10 = arith.cmpf ogt, %8, %9 : vector<14x512xf32>
    %cst_7 = arith.constant 2.000000e-02 : f32
    %11 = vector.broadcast %cst_7 : f32 to vector<14x512xf32>
    %12 = arith.mulf %11, %8 : vector<14x512xf32>
    %13 = arith.select %10, %8, %12 : vector<14x512xi1>, vector<14x512xf32>
    %c0_8 = arith.constant 0 : index
    %c0_9 = arith.constant 0 : index
    %14 = vector.load %arg6[%c0_8, %c0_9] : memref<14x512xf32, #tpu.memory_space<vmem>>, vector<14x512xf32>
    %15 = arith.truncf %13 : vector<14x512xf32> to vector<14x512xbf16>
    %c0_10 = arith.constant 0 : index
    %c0_11 = arith.constant 0 : index
    %16 = vector.load %arg4[%c0_10, %c0_11] : memref<512x512xbf16, #tpu.memory_space<vmem>>, vector<512x512xbf16>
    %cst_12 = arith.constant dense<0.000000e+00> : vector<14x512xf32>
    %17 = tpu.matmul %15, %16, %cst_12 {dimension_numbers = #tpu.dot_dimension_numbers<[1], [1], [0], [0], [0, 0, 1, 0], [], []>} : vector<14x512xbf16>, vector<512x512xbf16>, vector<14x512xf32> -> vector<14x512xf32>
    %18 = arith.addf %14, %17 : vector<14x512xf32>
    %c0_13 = arith.constant 0 : index
    %c0_14 = arith.constant 0 : index
    %19 = vector.load %arg6[%c0_13, %c0_14] : memref<14x512xf32, #tpu.memory_space<vmem>>, vector<14x512xf32>
    tpu.vector_store %arg6[%c0_13, %c0_14], %18 {strides = array<i32>} : memref<14x512xf32, #tpu.memory_space<vmem>>, vector<14x512xf32>,
    return
  }
  func.func @transform_0(%arg0: i32) -> (i32, i32) {
    %c0_i32 = arith.constant 0 : i32
    %c0_i32_0 = arith.constant 0 : i32
    %c0_i32_1 = arith.constant 0 : i32
    return %c0_i32, %c0_i32_0 : i32, i32
  }
  func.func @transform_1(%arg0: i32) -> (i32, i32) {
    %c0_i32 = arith.constant 0 : i32
    %c0_i32_0 = arith.constant 0 : i32
    return %arg0, %c0_i32 : i32, i32
  }
  func.func @transform_2(%arg0: i32) -> (i32, i32) {
    %c0_i32 = arith.constant 0 : i32
    %c0_i32_0 = arith.constant 0 : i32
    return %c0_i32, %arg0 : i32, i32
  }
  func.func @transform_3(%arg0: i32) -> (i32, i32) {
    %c0_i32 = arith.constant 0 : i32
    %c0_i32_0 = arith.constant 0 : i32
    return %c0_i32, %arg0 : i32, i32
  }
  func.func @transform_4(%arg0: i32) -> (i32, i32) {
    %c0_i32 = arith.constant 0 : i32
    %c0_i32_0 = arith.constant 0 : i32
    %c0_i32_1 = arith.constant 0 : i32
    return %c0_i32, %c0_i32_0 : i32, i32
  }
  func.func @transform_5(%arg0: i32) -> (i32, i32) {
    %c0_i32 = arith.constant 0 : i32
    %c0_i32_0 = arith.constant 0 : i32
    %c0_i32_1 = arith.constant 0 : i32
    return %c0_i32, %c0_i32_0 : i32, i32
  }
}

</mosaic_0001>

<llo_original>
// kernel: tpu_custom_call.1
$region0: #{tpu_custom_call.1}
  #allocation0 [shape = 'u32[]', space=smem, size = 0x4, offset = 0x4, fixed_abs, tag = 'smem constant byte address 0x4 - core index']
  #allocation1 [shape = 'u32[144,128]{1,0:T(1,128)}', space=vmem, size = 0x12000, scoped, tag = 'internal scratch']
  %s0 = inlined_call_operand.hbm [shape: bf16[14,512], index: 0, kind: input, shape index: {}]
  %s1 = inlined_call_operand.hbm [shape: bf16[512,512], index: 1, kind: input, shape index: {}]
  %s2 = inlined_call_operand.vmem [shape: f32[1,512], index: 2, kind: input, shape index: {}]
  %s3 = inlined_call_operand.hbm [shape: bf16[512,512], index: 3, kind: input, shape index: {}]
  %s4 = inlined_call_operand.vmem [shape: f32[1,512], index: 4, kind: input, shape index: {}]
  %s5 = inlined_call_operand.hbm [shape: f32[14,512], index: 5, kind: output, shape index: {}]
  %s6 = sld [smem:[#allocation0]]
  $region46: #{tpu_custom_call.1} parent=0
    _
  %s8 = ssub.s32 1, %s6
  %s9 = scalar_select 0, %s8, %s6
  $region1: #{tpu_custom_call.1} parent=0
    #allocation2 [shape = 'u8[16384]{0}', space=vmem, size = 0x4000, scoped, tag = 'input window, operand 0, single buffered']
    #allocation3 [shape = 's32[1]{0}', space=sflag, size = 0x4, scoped, tag = 'scoped memory for tpu_custom_call.1']
    #allocation4 [shape = 's32[1]{0}', space=sflag, size = 0x4, scoped, tag = 'scoped memory for tpu_custom_call.1']
    #allocation5 [shape = 'u8[524288]{0}', space=vmem, size = 0x80000, scoped, tag = 'input window, operand 1, single buffered']
    #allocation6 [shape = 's32[1]{0}', space=sflag, size = 0x4, scoped, tag = 'scoped memory for tpu_custom_call.1']
    #allocation7 [shape = 'u8[524288]{0}', space=vmem, size = 0x80000, scoped, tag = 'input window, operand 3, single buffered']
    #allocation8 [shape = 'u8[32768]{0}', space=vmem, size = 0x8000, scoped, tag = 'output window, operand 0, single buffered']
    %10 = vsyncpa [#allocation3], 0
    %11 = vsyncpa [#allocation6], 0
    %12 = vsyncpa [#allocation4], 0
    // Predicated region
    $region2: #{tpu_custom_call.1} parent=1 // pred_check
      _
    $region3: #{tpu_custom_call.1} parent=1 // pred_check_branch
      %14 = sbr.rel (0) target = $region5
    $region4: #{tpu_custom_call.1} parent=1 // pred_region
      %s16 = ssub.s32 512, 512
      %17 = vsyncadd [#allocation3], %s16
      %s18 = sshll.u32 [#allocation2], 4
      %s19 = int_to_ptr.vmem [resolvable:$true] %s18
      %24 = dma.hbm_to_vmem [thread:$0]  %s0, 512, %s19, [#allocation3], 256, 256, 16
    $region5: #{tpu_custom_call.1} parent=1 // pred_fallthru
      _
    // Predicated region
    $region6: #{tpu_custom_call.1} parent=1 // pred_check
      _
    $region7: #{tpu_custom_call.1} parent=1 // pred_check_branch
      %26 = sbr.rel (0) target = $region9
    $region8: #{tpu_custom_call.1} parent=1 // pred_region
      %s28 = ssub.s32 16384, 16384
      %29 = vsyncadd [#allocation6], %s28
      %s30 = sshll.u32 [#allocation5], 4
      %s31 = int_to_ptr.vmem [resolvable:$true] %s30
      %36 = dma.hbm_to_vmem [thread:$0]  %s1, 16384, %s31, [#allocation6], 256, 256, 16
    $region9: #{tpu_custom_call.1} parent=1 // pred_fallthru
      _
    // Predicated region
    $region10: #{tpu_custom_call.1} parent=1 // pred_check
      _
    $region11: #{tpu_custom_call.1} parent=1 // pred_check_branch
      %38 = sbr.rel (0) target = $region13
    $region12: #{tpu_custom_call.1} parent=1 // pred_region
      _
    $region13: #{tpu_custom_call.1} parent=1 // pred_fallthru
      _
    // Predicated region
    $region14: #{tpu_custom_call.1} parent=1 // pred_check
      _
    $region15: #{tpu_custom_call.1} parent=1 // pred_check_branch
      %40 = sbr.rel (0) target = $region17
    $region16: #{tpu_custom_call.1} parent=1 // pred_region
      %s42 = ssub.s32 16384, 16384
      %43 = vsyncadd [#allocation6], %s42
      %s44 = sshll.u32 [#allocation7], 4
      %s45 = int_to_ptr.vmem [resolvable:$true] %s44
      %50 = dma.hbm_to_vmem [thread:$0]  %s3, 16384, %s45, [#allocation6], 256, 256, 16
    $region17: #{tpu_custom_call.1} parent=1 // pred_fallthru
      _
    // Predicated region
    $region18: #{tpu_custom_call.1} parent=1 // pred_check
      _
    $region19: #{tpu_custom_call.1} parent=1 // pred_check_branch
      %52 = sbr.rel (0) target = $region21
    $region20: #{tpu_custom_call.1} parent=1 // pred_region
      _
    $region21: #{tpu_custom_call.1} parent=1 // pred_fallthru
      _
    // Predicated region
    $region22: #{tpu_custom_call.1} parent=1 // pred_check
      _
    $region23: #{tpu_custom_call.1} parent=1 // pred_check_branch
      %54 = sbr.rel (0) target = $region25
    $region24: #{tpu_custom_call.1} parent=1 // pred_region
      %55 = dma.done [#allocation3], 512
    $region25: #{tpu_custom_call.1} parent=1 // pred_fallthru
      _
    // Predicated region
    $region26: #{tpu_custom_call.1} parent=1 // pred_check
      _
    $region27: #{tpu_custom_call.1} parent=1 // pred_check_branch
      %57 = sbr.rel (0) target = $region29
    $region28: #{tpu_custom_call.1} parent=1 // pred_region
      %58 = dma.done [#allocation6], 16384
    $region29: #{tpu_custom_call.1} parent=1 // pred_fallthru
      _
    // Predicated region
    $region30: #{tpu_custom_call.1} parent=1 // pred_check
      _
    $region31: #{tpu_custom_call.1} parent=1 // pred_check_branch
      %60 = sbr.rel (0) target = $region33
    $region32: #{tpu_custom_call.1} parent=1 // pred_region
      %61 = dma.done [#allocation6], 16384
    $region33: #{tpu_custom_call.1} parent=1 // pred_fallthru
      _
    %p62 = scmp.eq.s32.totalorder 0, 0
    // Predicated region
    $region34: #{tpu_custom_call.1} parent=1 // pred_check
      %p63 = pneg %p62
    $region35: #{tpu_custom_call.1} parent=1 // pred_check_branch
      %65 = sbr.rel (%p63) target = $region37
    $region36: #{tpu_custom_call.1} parent=1 // pred_region
      %v66 = vld [vmem:[%s4] sm:$0xf]
      %v68 = vlaneseq
      %v69 = vshrl.u32 %v68, 7
      %v70 = vsub.s32 0, %v69
      %v71 = vrot.slane %v66, %v70
      %v72 = vlaneseq
      %v73 = vshrl.u32 %v72, 7
      %v74 = vsub.s32 1, %v73
      %v75 = vrot.slane %v66, %v74
      %v76 = vlaneseq
      %v77 = vshrl.u32 %v76, 7
      %v78 = vsub.s32 2, %v77
      %v79 = vrot.slane %v66, %v78
      %v80 = vlaneseq
      %v81 = vshrl.u32 %v80, 7
      %v82 = vsub.s32 3, %v81
      %v83 = vrot.slane %v66, %v82
      %88 = vst [vmem:[#allocation8] sm:$0xff] %v71
      %89 = vst [vmem:[#allocation8 + $0x8] sm:$0xff] %v75
      %90 = vst [vmem:[#allocation8 + $0x10] sm:$0xff] %v79
      %91 = vst [vmem:[#allocation8 + $0x18] sm:$0xff] %v83
      %92 = vst [vmem:[#allocation8 + $0x20] sm:$0x3f] %v71
      %93 = vst [vmem:[#allocation8 + $0x28] sm:$0x3f] %v75
      %94 = vst [vmem:[#allocation8 + $0x30] sm:$0x3f] %v79
      %95 = vst [vmem:[#allocation8 + $0x38] sm:$0x3f] %v83
    $region37: #{tpu_custom_call.1} parent=1 // pred_fallthru
      _
    %v96 = vld [vmem:[#allocation2] sm:$0xff]
    %v97 = vld [vmem:[#allocation2 + $0x8] sm:$0xff]
    %v98 = vld [vmem:[#allocation2 + $0x10] sm:$0x77]
    %v99 = vld [vmem:[#allocation2 + $0x18] sm:$0x77]
    %v100 = vld [vmem:[#allocation5] sm:$0xff]
    %v101 = vld [vmem:[#allocation5 + $0x8] sm:$0xff]
    %v102 = vld [vmem:[#allocation5 + $0x10] sm:$0xff]
    %v103 = vld [vmem:[#allocation5 + $0x18] sm:$0xff]
    %v104 = vld [vmem:[#allocation5 + $0x20] sm:$0xff]
    %v105 = vld [vmem:[#allocation5 + $0x28] sm:$0xff]
    %v106 = vld [vmem:[#allocation5 + $0x30] sm:$0xff]
    %v107 = vld [vmem:[#allocation5 + $0x38] sm:$0xff]
    %v108 = vld [vmem:[#allocation5 + $0x40] sm:$0xff]
    %v109 = vld [vmem:[#allocation5 + $0x48] sm:$0xff]
    %v110 = vld [vmem:[#allocation5 + $0x50] sm:$0xff]
    %v111 = vld [vmem:[#allocation5 + $0x58] sm:$0xff]
    %v112 = vld [vmem:[#allocation5 + $0x60] sm:$0xff]
    %v113 = vld [vmem:[#allocation5 + $0x68] sm:$0xff]
    %v114 = vld [vmem:[#allocation5 + $0x70] sm:$0xff]
    %v115 = vld [vmem:[#allocation5 + $0x78] sm:$0xff]
    %v116 = vld [vmem:[#allocation5 + $0x80] sm:$0xff]
    %v117 = vld [vmem:[#allocation5 + $0x88] sm:$0xff]
    %v118 = vld [vmem:[#allocation5 + $0x90] sm:$0xff]
    %v119 = vld [vmem:[#allocation5 + $0x98] sm:$0xff]
    %v120 = vld [vmem:[#allocation5 + $0xa0] sm:$0xff]
    %v121 = vld [vmem:[#allocation5 + $0xa8] sm:$0xff]
    %v122 = vld [vmem:[#allocation5 + $0xb0] sm:$0xff]
    %v123 = vld [vmem:[#allocation5 + $0xb8] sm:$0xff]
    %v124 = vld [vmem:[#allocation5 + $0xc0] sm:$0xff]
    %v125 = vld [vmem:[#allocation5 + $0xc8] sm:$0xff]
    %v126 = vld [vmem:[#allocation5 + $0xd0] sm:$0xff]
    %v127 = vld [vmem:[#allocation5 + $0xd8] sm:$0xff]
    %v128 = vld [vmem:[#allocation5 + $0xe0] sm:$0xff]
    %v129 = vld [vmem:[#allocation5 + $0xe8] sm:$0xff]
    %v130 = vld [vmem:[#allocation5 + $0xf0] sm:$0xff]
    %v131 = vld [vmem:[#allocation5 + $0xf8] sm:$0xff]
    %v132 = vld [vmem:[#allocation5 + $0x100] sm:$0xff]
    %v133 = vld [vmem:[#allocation5 + $0x108] sm:$0xff]
    %v134 = vld [vmem:[#allocation5 + $0x110] sm:$0xff]
    %v135 = vld [vmem:[#allocation5 + $0x118] sm:$0xff]
    %v136 = vld [vmem:[#allocation5 + $0x120] sm:$0xff]
    %v137 = vld [vmem:[#allocation5 + $0x128] sm:$0xff]
    %v138 = vld [vmem:[#allocation5 + $0x130] sm:$0xff]
    %v139 = vld [vmem:[#allocation5 + $0x138] sm:$0xff]
    %v140 = vld [vmem:[#allocation5 + $0x140] sm:$0xff]
    %v141 = vld [vmem:[#allocation5 + $0x148] sm:$0xff]
    %v142 = vld [vmem:[#allocation5 + $0x150] sm:$0xff]
    %v143 = vld [vmem:[#allocation5 + $0x158] sm:$0xff]
    %v144 = vld [vmem:[#allocation5 + $0x160] sm:$0xff]
    %v145 = vld [vmem:[#allocation5 + $0x168] sm:$0xff]
    %v146 = vld [vmem:[#allocation5 + $0x170] sm:$0xff]
    %v147 = vld [vmem:[#allocation5 + $0x178] sm:$0xff]
    %v148 = vld [vmem:[#allocation5 + $0x180] sm:$0xff]
    %v149 = vld [vmem:[#allocation5 + $0x188] sm:$0xff]
    %v150 = vld [vmem:[#allocation5 + $0x190] sm:$0xff]
    %v151 = vld [vmem:[#allocation5 + $0x198] sm:$0xff]
    %v152 = vld [vmem:[#allocation5 + $0x1a0] sm:$0xff]
    %v153 = vld [vmem:[#allocation5 + $0x1a8] sm:$0xff]
    %v154 = vld [vmem:[#allocation5 + $0x1b0] sm:$0xff]
    %v155 = vld [vmem:[#allocation5 + $0x1b8] sm:$0xff]
    %v156 = vld [vmem:[#allocation5 + $0x1c0] sm:$0xff]
    %v157 = vld [vmem:[#allocation5 + $0x1c8] sm:$0xff]
    %v158 = vld [vmem:[#allocation5 + $0x1d0] sm:$0xff]
    %v159 = vld [vmem:[#allocation5 + $0x1d8] sm:$0xff]
    %v160 = vld [vmem:[#allocation5 + $0x1e0] sm:$0xff]
    %v161 = vld [vmem:[#allocation5 + $0x1e8] sm:$0xff]
    %v162 = vld [vmem:[#allocation5 + $0x1f0] sm:$0xff]
    %v163 = vld [vmem:[#allocation5 + $0x1f8] sm:$0xff]
    %v164 = vld [vmem:[#allocation5 + $0x200] sm:$0xff]
    %v165 = vld [vmem:[#allocation5 + $0x208] sm:$0xff]
    %v166 = vld [vmem:[#allocation5 + $0x210] sm:$0xff]
    %v167 = vld [vmem:[#allocation5 + $0x218] sm:$0xff]
    %v168 = vld [vmem:[#allocation5 + $0x220] sm:$0xff]
    %v169 = vld [vmem:[#allocation5 + $0x228] sm:$0xff]
    %v170 = vld [vmem:[#allocation5 + $0x230] sm:$0xff]
    %v171 = vld [vmem:[#allocation5 + $0x238] sm:$0xff]
    %v172 = vld [vmem:[#allocation5 + $0x240] sm:$0xff]
    %v173 = vld [vmem:[#allocation5 + $0x248] sm:$0xff]
    %v174 = vld [vmem:[#allocation5 + $0x250] sm:$0xff]
    %v175 = vld [vmem:[#allocation5 + $0x258] sm:$0xff]
    %v176 = vld [vmem:[#allocation5 + $0x260] sm:$0xff]
    %v177 = vld [vmem:[#allocation5 + $0x268] sm:$0xff]
    %v178 = vld [vmem:[#allocation5 + $0x270] sm:$0xff]
    %v179 = vld [vmem:[#allocation5 + $0x278] sm:$0xff]
    %v180 = vld [vmem:[#allocation5 + $0x280] sm:$0xff]
    %v181 = vld [vmem:[#allocation5 + $0x288] sm:$0xff]
    %v182 = vld [vmem:[#allocation5 + $0x290] sm:$0xff]
    %v183 = vld [vmem:[#allocation5 + $0x298] sm:$0xff]
    %v184 = vld [vmem:[#allocation5 + $0x2a0] sm:$0xff]
    %v185 = vld [vmem:[#allocation5 + $0x2a8] sm:$0xff]
    %v186 = vld [vmem:[#allocation5 + $0x2b0] sm:$0xff]
    %v187 = vld [vmem:[#allocation5 + $0x2b8] sm:$0xff]
    %v188 = vld [vmem:[#allocation5 + $0x2c0] sm:$0xff]
    %v189 = vld [vmem:[#allocation5 + $0x2c8] sm:$0xff]
    %v190 = vld [vmem:[#allocation5 + $0x2d0] sm:$0xff]
    %v191 = vld [vmem:[#allocation5 + $0x2d8] sm:$0xff]
    %v192 = vld [vmem:[#allocation5 + $0x2e0] sm:$0xff]
    %v193 = vld [vmem:[#allocation5 + $0x2e8] sm:$0xff]
    %v194 = vld [vmem:[#allocation5 + $0x2f0] sm:$0xff]
    %v195 = vld [vmem:[#allocation5 + $0x2f8] sm:$0xff]
    %v196 = vld [vmem:[#allocation5 + $0x300] sm:$0xff]
    %v197 = vld [vmem:[#allocation5 + $0x308] sm:$0xff]
    %v198 = vld [vmem:[#allocation5 + $0x310] sm:$0xff]
    %v199 = vld [vmem:[#allocation5 + $0x318] sm:$0xff]
    %v200 = vld [vmem:[#allocation5 + $0x320] sm:$0xff]
    %v201 = vld [vmem:[#allocation5 + $0x328] sm:$0xff]
    %v202 = vld [vmem:[#allocation5 + $0x330] sm:$0xff]
    %v203 = vld [vmem:[#allocation5 + $0x338] sm:$0xff]
    %v204 = vld [vmem:[#allocation5 + $0x340] sm:$0xff]
    %v205 = vld [vmem:[#allocation5 + $0x348] sm:$0xff]
    %v206 = vld [vmem:[#allocation5 + $0x350] sm:$0xff]
    %v207 = vld [vmem:[#allocation5 + $0x358] sm:$0xff]
    %v208 = vld [vmem:[#allocation5 + $0x360] sm:$0xff]
    %v209 = vld [vmem:[#allocation5 + $0x368] sm:$0xff]
    %v210 = vld [vmem:[#allocation5 + $0x370] sm:$0xff]
    %v211 = vld [vmem:[#allocation5 + $0x378] sm:$0xff]
    %v212 = vld [vmem:[#allocation5 + $0x380] sm:$0xff]
    %v213 = vld [vmem:[#allocation5 + $0x388] sm:$0xff]
    %v214 = vld [vmem:[#allocation5 + $0x390] sm:$0xff]
    %v215 = vld [vmem:[#allocation5 + $0x398] sm:$0xff]
    %v216 = vld [vmem:[#allocation5 + $0x3a0] sm:$0xff]
    %v217 = vld [vmem:[#allocation5 + $0x3a8] sm:$0xff]
    %v218 = vld [vmem:[#allocation5 + $0x3b0] sm:$0xff]
    %v219 = vld [vmem:[#allocation5 + $0x3b8] sm:$0xff]
    %v220 = vld [vmem:[#allocation5 + $0x3c0] sm:$0xff]
    %v221 = vld [vmem:[#allocation5 + $0x3c8] sm:$0xff]
    %v222 = vld [vmem:[#allocation5 + $0x3d0] sm:$0xff]
    %v223 = vld [vmem:[#allocation5 + $0x3d8] sm:$0xff]
    %v224 = vld [vmem:[#allocation5 + $0x3e0] sm:$0xff]
    %v225 = vld [vmem:[#allocation5 + $0x3e8] sm:$0xff]
    %v226 = vld [vmem:[#allocation5 + $0x3f0] sm:$0xff]
    %v227 = vld [vmem:[#allocation5 + $0x3f8] sm:$0xff]
    %v228 = vld [vmem:[%s2] sm:$0xf]
    %v230 = vlaneseq
    %v231 = vshrl.u32 %v230, 7
    %v232 = vsub.s32 0, %v231
    %v233 = vrot.slane %v228, %v232
    %v234 = vlaneseq
    %v235 = vshrl.u32 %v234, 7
    %v236 = vsub.s32 1, %v235
    %v237 = vrot.slane %v228, %v236
    %v238 = vlaneseq
    %v239 = vshrl.u32 %v238, 7
    %v240 = vsub.s32 2, %v239
    %v241 = vrot.slane %v228, %v240
    %v242 = vlaneseq
    %v243 = vshrl.u32 %v242, 7
    %v244 = vsub.s32 3, %v243
    %v245 = vrot.slane %v228, %v244
    %v254 = vunpack.c.l.b16 %v96
    %v255 = vunpack.c.h.b16 %v96
    %v256 = vunpack.c.l.b16 %v97
    %v257 = vunpack.c.h.b16 %v97
    %v258 = vunpack.c.l.b16 %v98
    %v259 = vunpack.c.h.b16 %v98
    %v260 = vunpack.c.l.b16 %v99
    %v261 = vunpack.c.h.b16 %v99
    %v262 = vpack.c.b16 %v258, %v254
    %v263 = vpack.c.b16 %v259, %v255
    %v264 = vpack.c.b16 %v260, %v256
    %v265 = vpack.c.b16 %v261, %v257
    %v398 = vunpack.c.l.b16 %v100
    %v399 = vunpack.c.h.b16 %v100
    %v400 = vunpack.c.l.b16 %v101
    %v401 = vunpack.c.h.b16 %v101
    %v402 = vunpack.c.l.b16 %v102
    %v403 = vunpack.c.h.b16 %v102
    %v404 = vunpack.c.l.b16 %v103
    %v405 = vunpack.c.h.b16 %v103
    %v406 = vunpack.c.l.b16 %v104
    %v407 = vunpack.c.h.b16 %v104
    %v408 = vunpack.c.l.b16 %v105
    %v409 = vunpack.c.h.b16 %v105
    %v410 = vunpack.c.l.b16 %v106
    %v411 = vunpack.c.h.b16 %v106
    %v412 = vunpack.c.l.b16 %v107
    %v413 = vunpack.c.h.b16 %v107
    %v414 = vunpack.c.l.b16 %v108
    %v415 = vunpack.c.h.b16 %v108
    %v416 = vunpack.c.l.b16 %v109
    %v417 = vunpack.c.h.b16 %v109
    %v418 = vunpack.c.l.b16 %v110
    %v419 = vunpack.c.h.b16 %v110
    %v420 = vunpack.c.l.b16 %v111
    %v421 = vunpack.c.h.b16 %v111
    %v422 = vunpack.c.l.b16 %v112
    %v423 = vunpack.c.h.b16 %v112
    %v424 = vunpack.c.l.b16 %v113
    %v425 = vunpack.c.h.b16 %v113
    %v426 = vunpack.c.l.b16 %v114
    %v427 = vunpack.c.h.b16 %v114
    %v428 = vunpack.c.l.b16 %v115
    %v429 = vunpack.c.h.b16 %v115
    %v430 = vunpack.c.l.b16 %v116
    %v431 = vunpack.c.h.b16 %v116
    %v432 = vunpack.c.l.b16 %v117
    %v433 = vunpack.c.h.b16 %v117
    %v434 = vunpack.c.l.b16 %v118
    %v435 = vunpack.c.h.b16 %v118
    %v436 = vunpack.c.l.b16 %v119
    %v437 = vunpack.c.h.b16 %v119
    %v438 = vunpack.c.l.b16 %v120
    %v439 = vunpack.c.h.b16 %v120
    %v440 = vunpack.c.l.b16 %v121
    %v441 = vunpack.c.h.b16 %v121
    %v442 = vunpack.c.l.b16 %v122
    %v443 = vunpack.c.h.b16 %v122
    %v444 = vunpack.c.l.b16 %v123
    %v445 = vunpack.c.h.b16 %v123
    %v446 = vunpack.c.l.b16 %v124
    %v447 = vunpack.c.h.b16 %v124
    %v448 = vunpack.c.l.b16 %v125
    %v449 = vunpack.c.h.b16 %v125
    %v450 = vunpack.c.l.b16 %v126
    %v451 = vunpack.c.h.b16 %v126
    %v452 = vunpack.c.l.b16 %v127
    %v453 = vunpack.c.h.b16 %v127
    %v454 = vunpack.c.l.b16 %v128
    %v455 = vunpack.c.h.b16 %v128
    %v456 = vunpack.c.l.b16 %v129
    %v457 = vunpack.c.h.b16 %v129
    %v458 = vunpack.c.l.b16 %v130
    %v459 = vunpack.c.h.b16 %v130
    %v460 = vunpack.c.l.b16 %v131
    %v461 = vunpack.c.h.b16 %v131
    %v462 = vunpack.c.l.b16 %v132
    %v463 = vunpack.c.h.b16 %v132
    %v464 = vunpack.c.l.b16 %v133
    %v465 = vunpack.c.h.b16 %v133
    %v466 = vunpack.c.l.b16 %v134
    %v467 = vunpack.c.h.b16 %v134
    %v468 = vunpack.c.l.b16 %v135
    %v469 = vunpack.c.h.b16 %v135
    %v470 = vunpack.c.l.b16 %v136
    %v471 = vunpack.c.h.b16 %v136
    %v472 = vunpack.c.l.b16 %v137
    %v473 = vunpack.c.h.b16 %v137
    %v474 = vunpack.c.l.b16 %v138
    %v475 = vunpack.c.h.b16 %v138
    %v476 = vunpack.c.l.b16 %v139
    %v477 = vunpack.c.h.b16 %v139
    %v478 = vunpack.c.l.b16 %v140
    %v479 = vunpack.c.h.b16 %v140
    %v480 = vunpack.c.l.b16 %v141
    %v481 = vunpack.c.h.b16 %v141
    %v482 = vunpack.c.l.b16 %v142
    %v483 = vunpack.c.h.b16 %v142
    %v484 = vunpack.c.l.b16 %v143
    %v485 = vunpack.c.h.b16 %v143
    %v486 = vunpack.c.l.b16 %v144
    %v487 = vunpack.c.h.b16 %v144
    %v488 = vunpack.c.l.b16 %v145
    %v489 = vunpack.c.h.b16 %v145
    %v490 = vunpack.c.l.b16 %v146
    %v491 = vunpack.c.h.b16 %v146
    %v492 = vunpack.c.l.b16 %v147
    %v493 = vunpack.c.h.b16 %v147
    %v494 = vunpack.c.l.b16 %v148
    %v495 = vunpack.c.h.b16 %v148
    %v496 = vunpack.c.l.b16 %v149
    %v497 = vunpack.c.h.b16 %v149
    %v498 = vunpack.c.l.b16 %v150
    %v499 = vunpack.c.h.b16 %v150
    %v500 = vunpack.c.l.b16 %v151
    %v501 = vunpack.c.h.b16 %v151
    %v502 = vunpack.c.l.b16 %v152
    %v503 = vunpack.c.h.b16 %v152
    %v504 = vunpack.c.l.b16 %v153
    %v505 = vunpack.c.h.b16 %v153
    %v506 = vunpack.c.l.b16 %v154
    %v507 = vunpack.c.h.b16 %v154
    %v508 = vunpack.c.l.b16 %v155
    %v509 = vunpack.c.h.b16 %v155
    %v510 = vunpack.c.l.b16 %v156
    %v511 = vunpack.c.h.b16 %v156
    %v512 = vunpack.c.l.b16 %v157
    %v513 = vunpack.c.h.b16 %v157
    %v514 = vunpack.c.l.b16 %v158
    %v515 = vunpack.c.h.b16 %v158
    %v516 = vunpack.c.l.b16 %v159
    %v517 = vunpack.c.h.b16 %v159
    %v518 = vunpack.c.l.b16 %v160
    %v519 = vunpack.c.h.b16 %v160
    %v520 = vunpack.c.l.b16 %v161
    %v521 = vunpack.c.h.b16 %v161
    %v522 = vunpack.c.l.b16 %v162
    %v523 = vunpack.c.h.b16 %v162
    %v524 = vunpack.c.l.b16 %v163
    %v525 = vunpack.c.h.b16 %v163
    %v526 = vunpack.c.l.b16 %v164
    %v527 = vunpack.c.h.b16 %v164
    %v528 = vunpack.c.l.b16 %v165
    %v529 = vunpack.c.h.b16 %v165
    %v530 = vunpack.c.l.b16 %v166
    %v531 = vunpack.c.h.b16 %v166
    %v532 = vunpack.c.l.b16 %v167
    %v533 = vunpack.c.h.b16 %v167
    %v534 = vunpack.c.l.b16 %v168
    %v535 = vunpack.c.h.b16 %v168
    %v536 = vunpack.c.l.b16 %v169
    %v537 = vunpack.c.h.b16 %v169
    %v538 = vunpack.c.l.b16 %v170
    %v539 = vunpack.c.h.b16 %v170
    %v540 = vunpack.c.l.b16 %v171
    %v541 = vunpack.c.h.b16 %v171
    %v542 = vunpack.c.l.b16 %v172
    %v543 = vunpack.c.h.b16 %v172
    %v544 = vunpack.c.l.b16 %v173
    %v545 = vunpack.c.h.b16 %v173
    %v546 = vunpack.c.l.b16 %v174
    %v547 = vunpack.c.h.b16 %v174
    %v548 = vunpack.c.l.b16 %v175
    %v549 = vunpack.c.h.b16 %v175
    %v550 = vunpack.c.l.b16 %v176
    %v551 = vunpack.c.h.b16 %v176
    %v552 = vunpack.c.l.b16 %v177
    %v553 = vunpack.c.h.b16 %v177
    %v554 = vunpack.c.l.b16 %v178
    %v555 = vunpack.c.h.b16 %v178
    %v556 = vunpack.c.l.b16 %v179
    %v557 = vunpack.c.h.b16 %v179
    %v558 = vunpack.c.l.b16 %v180
    %v559 = vunpack.c.h.b16 %v180
    %v560 = vunpack.c.l.b16 %v181
    %v561 = vunpack.c.h.b16 %v181
    %v562 = vunpack.c.l.b16 %v182
    %v563 = vunpack.c.h.b16 %v182
    %v564 = vunpack.c.l.b16 %v183
    %v565 = vunpack.c.h.b16 %v183
    %v566 = vunpack.c.l.b16 %v184
    %v567 = vunpack.c.h.b16 %v184
    %v568 = vunpack.c.l.b16 %v185
    %v569 = vunpack.c.h.b16 %v185
    %v570 = vunpack.c.l.b16 %v186
    %v571 = vunpack.c.h.b16 %v186
    %v572 = vunpack.c.l.b16 %v187
    %v573 = vunpack.c.h.b16 %v187
    %v574 = vunpack.c.l.b16 %v188
    %v575 = vunpack.c.h.b16 %v188
    %v576 = vunpack.c.l.b16 %v189
    %v577 = vunpack.c.h.b16 %v189
    %v578 = vunpack.c.l.b16 %v190
    %v579 = vunpack.c.h.b16 %v190
    %v580 = vunpack.c.l.b16 %v191
    %v581 = vunpack.c.h.b16 %v191
    %v582 = vunpack.c.l.b16 %v192
    %v583 = vunpack.c.h.b16 %v192
    %v584 = vunpack.c.l.b16 %v193
    %v585 = vunpack.c.h.b16 %v193
    %v586 = vunpack.c.l.b16 %v194
    %v587 = vunpack.c.h.b16 %v194
    %v588 = vunpack.c.l.b16 %v195
    %v589 = vunpack.c.h.b16 %v195
    %v590 = vunpack.c.l.b16 %v196
    %v591 = vunpack.c.h.b16 %v196
    %v592 = vunpack.c.l.b16 %v197
    %v593 = vunpack.c.h.b16 %v197
    %v594 = vunpack.c.l.b16 %v198
    %v595 = vunpack.c.h.b16 %v198
    %v596 = vunpack.c.l.b16 %v199
    %v597 = vunpack.c.h.b16 %v199
    %v598 = vunpack.c.l.b16 %v200
    %v599 = vunpack.c.h.b16 %v200
    %v600 = vunpack.c.l.b16 %v201
    %v601 = vunpack.c.h.b16 %v201
    %v602 = vunpack.c.l.b16 %v202
    %v603 = vunpack.c.h.b16 %v202
    %v604 = vunpack.c.l.b16 %v203
    %v605 = vunpack.c.h.b16 %v203
    %v606 = vunpack.c.l.b16 %v204
    %v607 = vunpack.c.h.b16 %v204
    %v608 = vunpack.c.l.b16 %v205
    %v609 = vunpack.c.h.b16 %v205
    %v610 = vunpack.c.l.b16 %v206
    %v611 = vunpack.c.h.b16 %v206
    %v612 = vunpack.c.l.b16 %v207
    %v613 = vunpack.c.h.b16 %v207
    %v614 = vunpack.c.l.b16 %v208
    %v615 = vunpack.c.h.b16 %v208
    %v616 = vunpack.c.l.b16 %v209
    %v617 = vunpack.c.h.b16 %v209
    %v618 = vunpack.c.l.b16 %v210
    %v619 = vunpack.c.h.b16 %v210
    %v620 = vunpack.c.l.b16 %v211
    %v621 = vunpack.c.h.b16 %v211
    %v622 = vunpack.c.l.b16 %v212
    %v623 = vunpack.c.h.b16 %v212
    %v624 = vunpack.c.l.b16 %v213
    %v625 = vunpack.c.h.b16 %v213
    %v626 = vunpack.c.l.b16 %v214
    %v627 = vunpack.c.h.b16 %v214
    %v628 = vunpack.c.l.b16 %v215
    %v629 = vunpack.c.h.b16 %v215
    %v630 = vunpack.c.l.b16 %v216
    %v631 = vunpack.c.h.b16 %v216
    %v632 = vunpack.c.l.b16 %v217
    %v633 = vunpack.c.h.b16 %v217
    %v634 = vunpack.c.l.b16 %v218
    %v635 = vunpack.c.h.b16 %v218
    %v636 = vunpack.c.l.b16 %v219
    %v637 = vunpack.c.h.b16 %v219
    %v638 = vunpack.c.l.b16 %v220
    %v639 = vunpack.c.h.b16 %v220
    %v640 = vunpack.c.l.b16 %v221
    %v641 = vunpack.c.h.b16 %v221
    %v642 = vunpack.c.l.b16 %v222
    %v643 = vunpack.c.h.b16 %v222
    %v644 = vunpack.c.l.b16 %v223
    %v645 = vunpack.c.h.b16 %v223
    %v646 = vunpack.c.l.b16 %v224
    %v647 = vunpack.c.h.b16 %v224
    %v648 = vunpack.c.l.b16 %v225
    %v649 = vunpack.c.h.b16 %v225
    %v650 = vunpack.c.l.b16 %v226
    %v651 = vunpack.c.h.b16 %v226
    %v652 = vunpack.c.l.b16 %v227
    %v653 = vunpack.c.h.b16 %v227
    %v654 = vpack.c.b16 %v402, %v398
    %v655 = vpack.c.b16 %v403, %v399
    %v656 = vpack.c.b16 %v404, %v400
    %v657 = vpack.c.b16 %v405, %v401
    %v658 = vpack.c.b16 %v410, %v406
    %v659 = vpack.c.b16 %v411, %v407
    %v660 = vpack.c.b16 %v412, %v408
    %v661 = vpack.c.b16 %v413, %v409
    %v662 = vpack.c.b16 %v418, %v414
    %v663 = vpack.c.b16 %v419, %v415
    %v664 = vpack.c.b16 %v420, %v416
    %v665 = vpack.c.b16 %v421, %v417
    %v666 = vpack.c.b16 %v426, %v422
    %v667 = vpack.c.b16 %v427, %v423
    %v668 = vpack.c.b16 %v428, %v424
    %v669 = vpack.c.b16 %v429, %v425
    %v670 = vpack.c.b16 %v434, %v430
    %v671 = vpack.c.b16 %v435, %v431
    %v672 = vpack.c.b16 %v436, %v432
    %v673 = vpack.c.b16 %v437, %v433
    %v674 = vpack.c.b16 %v442, %v438
    %v675 = vpack.c.b16 %v443, %v439
    %v676 = vpack.c.b16 %v444, %v440
    %v677 = vpack.c.b16 %v445, %v441
    %v678 = vpack.c.b16 %v450, %v446
    %v679 = vpack.c.b16 %v451, %v447
    %v680 = vpack.c.b16 %v452, %v448
    %v681 = vpack.c.b16 %v453, %v449
    %v682 = vpack.c.b16 %v458, %v454
    %v683 = vpack.c.b16 %v459, %v455
    %v684 = vpack.c.b16 %v460, %v456
    %v685 = vpack.c.b16 %v461, %v457
    %v686 = vpack.c.b16 %v466, %v462
    %v687 = vpack.c.b16 %v467, %v463
    %v688 = vpack.c.b16 %v468, %v464
    %v689 = vpack.c.b16 %v469, %v465
    %v690 = vpack.c.b16 %v474, %v470
    %v691 = vpack.c.b16 %v475, %v471
    %v692 = vpack.c.b16 %v476, %v472
    %v693 = vpack.c.b16 %v477, %v473
    %v694 = vpack.c.b16 %v482, %v478
    %v695 = vpack.c.b16 %v483, %v479
    %v696 = vpack.c.b16 %v484, %v480
    %v697 = vpack.c.b16 %v485, %v481
    %v698 = vpack.c.b16 %v490, %v486
    %v699 = vpack.c.b16 %v491, %v487
    %v700 = vpack.c.b16 %v492, %v488
    %v701 = vpack.c.b16 %v493, %v489
    %v702 = vpack.c.b16 %v498, %v494
    %v703 = vpack.c.b16 %v499, %v495
    %v704 = vpack.c.b16 %v500, %v496
    %v705 = vpack.c.b16 %v501, %v497
    %v706 = vpack.c.b16 %v506, %v502
    %v707 = vpack.c.b16 %v507, %v503
    %v708 = vpack.c.b16 %v508, %v504
    %v709 = vpack.c.b16 %v509, %v505
    %v710 = vpack.c.b16 %v514, %v510
    %v711 = vpack.c.b16 %v515, %v511
    %v712 = vpack.c.b16 %v516, %v512
    %v713 = vpack.c.b16 %v517, %v513
    %v714 = vpack.c.b16 %v522, %v518
    %v715 = vpack.c.b16 %v523, %v519
    %v716 = vpack.c.b16 %v524, %v520
    %v717 = vpack.c.b16 %v525, %v521
    %v718 = vpack.c.b16 %v530, %v526
    %v719 = vpack.c.b16 %v531, %v527
    %v720 = vpack.c.b16 %v532, %v528
    %v721 = vpack.c.b16 %v533, %v529
    %v722 = vpack.c.b16 %v538, %v534
    %v723 = vpack.c.b16 %v539, %v535
    %v724 = vpack.c.b16 %v540, %v536
    %v725 = vpack.c.b16 %v541, %v537
    %v726 = vpack.c.b16 %v546, %v542
    %v727 = vpack.c.b16 %v547, %v543
    %v728 = vpack.c.b16 %v548, %v544
    %v729 = vpack.c.b16 %v549, %v545
    %v730 = vpack.c.b16 %v554, %v550
    %v731 = vpack.c.b16 %v555, %v551
    %v732 = vpack.c.b16 %v556, %v552
    %v733 = vpack.c.b16 %v557, %v553
    %v734 = vpack.c.b16 %v562, %v558
    %v735 = vpack.c.b16 %v563, %v559
    %v736 = vpack.c.b16 %v564, %v560
    %v737 = vpack.c.b16 %v565, %v561
    %v738 = vpack.c.b16 %v570, %v566
    %v739 = vpack.c.b16 %v571, %v567
    %v740 = vpack.c.b16 %v572, %v568
    %v741 = vpack.c.b16 %v573, %v569
    %v742 = vpack.c.b16 %v578, %v574
    %v743 = vpack.c.b16 %v579, %v575
    %v744 = vpack.c.b16 %v580, %v576
    %v745 = vpack.c.b16 %v581, %v577
    %v746 = vpack.c.b16 %v586, %v582
    %v747 = vpack.c.b16 %v587, %v583
    %v748 = vpack.c.b16 %v588, %v584
    %v749 = vpack.c.b16 %v589, %v585
    %v750 = vpack.c.b16 %v594, %v590
    %v751 = vpack.c.b16 %v595, %v591
    %v752 = vpack.c.b16 %v596, %v592
    %v753 = vpack.c.b16 %v597, %v593
    %v754 = vpack.c.b16 %v602, %v598
    %v755 = vpack.c.b16 %v603, %v599
    %v756 = vpack.c.b16 %v604, %v600
    %v757 = vpack.c.b16 %v605, %v601
    %v758 = vpack.c.b16 %v610, %v606
    %v759 = vpack.c.b16 %v611, %v607
    %v760 = vpack.c.b16 %v612, %v608
    %v761 = vpack.c.b16 %v613, %v609
    %v762 = vpack.c.b16 %v618, %v614
    %v763 = vpack.c.b16 %v619, %v615
    %v764 = vpack.c.b16 %v620, %v616
    %v765 = vpack.c.b16 %v621, %v617
    %v766 = vpack.c.b16 %v626, %v622
    %v767 = vpack.c.b16 %v627, %v623
    %v768 = vpack.c.b16 %v628, %v624
    %v769 = vpack.c.b16 %v629, %v625
    %v770 = vpack.c.b16 %v634, %v630
    %v771 = vpack.c.b16 %v635, %v631
    %v772 = vpack.c.b16 %v636, %v632
    %v773 = vpack.c.b16 %v637, %v633
    %v774 = vpack.c.b16 %v642, %v638
    %v775 = vpack.c.b16 %v643, %v639
    %v776 = vpack.c.b16 %v644, %v640
    %v777 = vpack.c.b16 %v645, %v641
    %v778 = vpack.c.b16 %v650, %v646
    %v779 = vpack.c.b16 %v651, %v647
    %v780 = vpack.c.b16 %v652, %v648
    %v781 = vpack.c.b16 %v653, %v649
    %910 = vmatprep.subr.bf16.mxu0 %v655
    %911 = vmatpush1.bf16.xpose.msra.mxu0 %v654
    %912 = vmatprep.subr.bf16.mxu0 %v659
    %913 = vmatpush1.bf16.xpose.msra.mxu0 %v658
    %914 = vmatprep.subr.bf16.mxu0 %v663
    %915 = vmatpush1.bf16.xpose.msra.mxu0 %v662
    %916 = vmatprep.subr.bf16.mxu0 %v667
    %917 = vmatpush1.bf16.xpose.msra.mxu0 %v666
    %918 = vmatprep.subr.bf16.mxu0 %v671
    %919 = vmatpush1.bf16.xpose.msra.mxu0 %v670
    %920 = vmatprep.subr.bf16.mxu0 %v675
    %921 = vmatpush1.bf16.xpose.msra.mxu0 %v674
    %922 = vmatprep.subr.bf16.mxu0 %v679
    %923 = vmatpush1.bf16.xpose.msra.mxu0 %v678
    %924 = vmatprep.subr.bf16.mxu0 %v683
    %925 = vmatpush1.bf16.xpose.msra.mxu0 %v682
    %926 = vmatprep.subr.bf16.mxu0 %v687
    %927 = vmatpush1.bf16.xpose.msra.mxu0 %v686
    %928 = vmatprep.subr.bf16.mxu0 %v691
    %929 = vmatpush1.bf16.xpose.msra.mxu0 %v690
    %930 = vmatprep.subr.bf16.mxu0 %v695
    %931 = vmatpush1.bf16.xpose.msra.mxu0 %v694
    %932 = vmatprep.subr.bf16.mxu0 %v699
    %933 = vmatpush1.bf16.xpose.msra.mxu0 %v698
    %934 = vmatprep.subr.bf16.mxu0 %v703
    %935 = vmatpush1.bf16.xpose.msra.mxu0 %v702
    %936 = vmatprep.subr.bf16.mxu0 %v707
    %937 = vmatpush1.bf16.xpose.msra.mxu0 %v706
    %938 = vmatprep.subr.bf16.mxu0 %v711
    %939 = vmatpush1.bf16.xpose.msra.mxu0 %v710
    %940 = vmatprep.subr.bf16.mxu0 %v715
    %941 = vmatpush1.bf16.xpose.msra.mxu0 %v714
    %942 = vmatprep.mubr.bf16.mxu0 %v263
    %943 = vmatmul.mubr.bf16.gmra.mrb[0].mxu0 %v262
    %v944 = vpop.f32.mrb[0].mxu0
    %v945 = vadd.f32 %v233, %v944
    %v946 = vpop.f32.mrb[0].mxu0
    %v947 = vadd.f32 %v237, %v946
    %v948 = vpop.f32.mrb[0].mxu0
    %v949 = vadd.f32 %v233, %v948
    %v950 = vpop.f32.mrb[0].mxu0
    %v951 = vadd.f32 %v237, %v950
    %952 = vdwg.mxu0
    %953 = vmatprep.subr.bf16.mxu0 %v657
    %954 = vmatpush1.bf16.xpose.msra.mxu0 %v656
    %955 = vmatprep.subr.bf16.mxu0 %v661
    %956 = vmatpush1.bf16.xpose.msra.mxu0 %v660
    %957 = vmatprep.subr.bf16.mxu0 %v665
    %958 = vmatpush1.bf16.xpose.msra.mxu0 %v664
    %959 = vmatprep.subr.bf16.mxu0 %v669
    %960 = vmatpush1.bf16.xpose.msra.mxu0 %v668
    %961 = vmatprep.subr.bf16.mxu0 %v673
    %962 = vmatpush1.bf16.xpose.msra.mxu0 %v672
    %963 = vmatprep.subr.bf16.mxu0 %v677
    %964 = vmatpush1.bf16.xpose.msra.mxu0 %v676
    %965 = vmatprep.subr.bf16.mxu0 %v681
    %966 = vmatpush1.bf16.xpose.msra.mxu0 %v680
    %967 = vmatprep.subr.bf16.mxu0 %v685
    %968 = vmatpush1.bf16.xpose.msra.mxu0 %v684
    %969 = vmatprep.subr.bf16.mxu0 %v689
    %970 = vmatpush1.bf16.xpose.msra.mxu0 %v688
    %971 = vmatprep.subr.bf16.mxu0 %v693
    %972 = vmatpush1.bf16.xpose.msra.mxu0 %v692
    %973 = vmatprep.subr.bf16.mxu0 %v697
    %974 = vmatpush1.bf16.xpose.msra.mxu0 %v696
    %975 = vmatprep.subr.bf16.mxu0 %v701
    %976 = vmatpush1.bf16.xpose.msra.mxu0 %v700
    %977 = vmatprep.subr.bf16.mxu0 %v705
    %978 = vmatpush1.bf16.xpose.msra.mxu0 %v704
    %979 = vmatprep.subr.bf16.mxu0 %v709
    %980 = vmatpush1.bf16.xpose.msra.mxu0 %v708
    %981 = vmatprep.subr.bf16.mxu0 %v713
    %982 = vmatpush1.bf16.xpose.msra.mxu0 %v712
    %983 = vmatprep.subr.bf16.mxu0 %v717
    %984 = vmatpush1.bf16.xpose.msra.mxu0 %v716
    %985 = vmatprep.mubr.bf16.mxu0 %v265
    %986 = vmatmul.mubr.bf16.gmra.mrb[0].mxu0 %v264
    %v987 = vpop.f32.mrb[0].mxu0
    %v988 = vadd.f32 %v945, %v987
    %v989 = vpop.f32.mrb[0].mxu0
    %v990 = vadd.f32 %v947, %v989
    %v991 = vpop.f32.mrb[0].mxu0
    %v992 = vadd.f32 %v949, %v991
    %v993 = vpop.f32.mrb[0].mxu0
    %v994 = vadd.f32 %v951, %v993
    %995 = vdwg.mxu0
    %996 = vmatprep.subr.bf16.mxu0 %v719
    %997 = vmatpush1.bf16.xpose.msra.mxu0 %v718
    %998 = vmatprep.subr.bf16.mxu0 %v723
    %999 = vmatpush1.bf16.xpose.msra.mxu0 %v722
    %1000 = vmatprep.subr.bf16.mxu0 %v727
    %1001 = vmatpush1.bf16.xpose.msra.mxu0 %v726
    %1002 = vmatprep.subr.bf16.mxu0 %v731
    %1003 = vmatpush1.bf16.xpose.msra.mxu0 %v730
    %1004 = vmatprep.subr.bf16.mxu0 %v735
    %1005 = vmatpush1.bf16.xpose.msra.mxu0 %v734
    %1006 = vmatprep.subr.bf16.mxu0 %v739
    %1007 = vmatpush1.bf16.xpose.msra.mxu0 %v738
    %1008 = vmatprep.subr.bf16.mxu0 %v743
    %1009 = vmatpush1.bf16.xpose.msra.mxu0 %v742
    %1010 = vmatprep.subr.bf16.mxu0 %v747
    %1011 = vmatpush1.bf16.xpose.msra.mxu0 %v746
    %1012 = vmatprep.subr.bf16.mxu0 %v751
    %1013 = vmatpush1.bf16.xpose.msra.mxu0 %v750
    %1014 = vmatprep.subr.bf16.mxu0 %v755
    %1015 = vmatpush1.bf16.xpose.msra.mxu0 %v754
    %1016 = vmatprep.subr.bf16.mxu0 %v759
    %1017 = vmatpush1.bf16.xpose.msra.mxu0 %v758
    %1018 = vmatprep.subr.bf16.mxu0 %v763
    %1019 = vmatpush1.bf16.xpose.msra.mxu0 %v762
    %1020 = vmatprep.subr.bf16.mxu0 %v767
    %1021 = vmatpush1.bf16.xpose.msra.mxu0 %v766
    %1022 = vmatprep.subr.bf16.mxu0 %v771
    %1023 = vmatpush1.bf16.xpose.msra.mxu0 %v770
    %1024 = vmatprep.subr.bf16.mxu0 %v775
    %1025 = vmatpush1.bf16.xpose.msra.mxu0 %v774
    %1026 = vmatprep.subr.bf16.mxu0 %v779
    %1027 = vmatpush1.bf16.xpose.msra.mxu0 %v778
    %1028 = vmatprep.mubr.bf16.mxu0 %v263
    %1029 = vmatmul.mubr.bf16.gmra.mrb[0].mxu0 %v262
    %v1030 = vpop.f32.mrb[0].mxu0
    %v1031 = vadd.f32 %v241, %v1030
    %v1032 = vpop.f32.mrb[0].mxu0
    %v1033 = vadd.f32 %v245, %v1032
    %v1034 = vpop.f32.mrb[0].mxu0
    %v1035 = vadd.f32 %v241, %v1034
    %v1036 = vpop.f32.mrb[0].mxu0
    %v1037 = vadd.f32 %v245, %v1036
    %1038 = vdwg.mxu0
    %1039 = vmatprep.subr.bf16.mxu0 %v721
    %1040 = vmatpush1.bf16.xpose.msra.mxu0 %v720
    %1041 = vmatprep.subr.bf16.mxu0 %v725
    %1042 = vmatpush1.bf16.xpose.msra.mxu0 %v724
    %1043 = vmatprep.subr.bf16.mxu0 %v729
    %1044 = vmatpush1.bf16.xpose.msra.mxu0 %v728
    %1045 = vmatprep.subr.bf16.mxu0 %v733
    %1046 = vmatpush1.bf16.xpose.msra.mxu0 %v732
    %1047 = vmatprep.subr.bf16.mxu0 %v737
    %1048 = vmatpush1.bf16.xpose.msra.mxu0 %v736
    %1049 = vmatprep.subr.bf16.mxu0 %v741
    %1050 = vmatpush1.bf16.xpose.msra.mxu0 %v740
    %1051 = vmatprep.subr.bf16.mxu0 %v745
    %1052 = vmatpush1.bf16.xpose.msra.mxu0 %v744
    %1053 = vmatprep.subr.bf16.mxu0 %v749
    %1054 = vmatpush1.bf16.xpose.msra.mxu0 %v748
    %1055 = vmatprep.subr.bf16.mxu0 %v753
    %1056 = vmatpush1.bf16.xpose.msra.mxu0 %v752
    %1057 = vmatprep.subr.bf16.mxu0 %v757
    %1058 = vmatpush1.bf16.xpose.msra.mxu0 %v756
    %1059 = vmatprep.subr.bf16.mxu0 %v761
    %1060 = vmatpush1.bf16.xpose.msra.mxu0 %v760
    %1061 = vmatprep.subr.bf16.mxu0 %v765
    %1062 = vmatpush1.bf16.xpose.msra.mxu0 %v764
    %1063 = vmatprep.subr.bf16.mxu0 %v769
    %1064 = vmatpush1.bf16.xpose.msra.mxu0 %v768
    %1065 = vmatprep.subr.bf16.mxu0 %v773
    %1066 = vmatpush1.bf16.xpose.msra.mxu0 %v772
    %1067 = vmatprep.subr.bf16.mxu0 %v777
    %1068 = vmatpush1.bf16.xpose.msra.mxu0 %v776
    %1069 = vmatprep.subr.bf16.mxu0 %v781
    %1070 = vmatpush1.bf16.xpose.msra.mxu0 %v780
    %1071 = vmatprep.mubr.bf16.mxu0 %v265
    %1072 = vmatmul.mubr.bf16.gmra.mrb[0].mxu0 %v264
    %v1073 = vpop.f32.mrb[0].mxu0
    %v1074 = vadd.f32 %v1031, %v1073
    %v1075 = vpop.f32.mrb[0].mxu0
    %v1076 = vadd.f32 %v1033, %v1075
    %v1077 = vpop.f32.mrb[0].mxu0
    %v1078 = vadd.f32 %v1035, %v1077
    %v1079 = vpop.f32.mrb[0].mxu0
    %v1080 = vadd.f32 %v1037, %v1079
    %1081 = vdwg.mxu0
    %vm1082 = vcmp.gt.f32.partialorder %v988, 0.0
    %vm1083 = vcmp.gt.f32.partialorder %v990, 0.0
    %vm1084 = vcmp.gt.f32.partialorder %v1074, 0.0
    %vm1085 = vcmp.gt.f32.partialorder %v1076, 0.0
    %vm1086 = vcmp.gt.f32.partialorder %v992, 0.0
    %vm1087 = vcmp.gt.f32.partialorder %v994, 0.0
    %vm1088 = vcmp.gt.f32.partialorder %v1078, 0.0
    %vm1089 = vcmp.gt.f32.partialorder %v1080, 0.0
    %v1090 = vmul.f32 %v988, 0.02
    %v1091 = vmul.f32 %v990, 0.02
    %v1092 = vmul.f32 %v1074, 0.02
    %v1093 = vmul.f32 %v1076, 0.02
    %v1094 = vmul.f32 %v992, 0.02
    %v1095 = vmul.f32 %v994, 0.02
    %v1096 = vmul.f32 %v1078, 0.02
    %v1097 = vmul.f32 %v1080, 0.02
    %v1098 = vsel %vm1082, %v988, %v1090
    %v1099 = vsel %vm1083, %v990, %v1091
    %v1100 = vsel %vm1084, %v1074, %v1092
    %v1101 = vsel %vm1085, %v1076, %v1093
    %v1102 = vsel %vm1086, %v992, %v1094
    %v1103 = vsel %vm1087, %v994, %v1095
    %v1104 = vsel %vm1088, %v1078, %v1096
    %v1105 = vsel %vm1089, %v1080, %v1097
    %v1106 = vld [vmem:[#allocation8] sm:$0xff]
    %v1107 = vld [vmem:[#allocation8 + $0x8] sm:$0xff]
    %v1108 = vld [vmem:[#allocation8 + $0x10] sm:$0xff]
    %v1109 = vld [vmem:[#allocation8 + $0x18] sm:$0xff]
    %v1110 = vld [vmem:[#allocation8 + $0x20] sm:$0x3f]
    %v1111 = vld [vmem:[#allocation8 + $0x28] sm:$0x3f]
    %v1112 = vld [vmem:[#allocation8 + $0x30] sm:$0x3f]
    %v1113 = vld [vmem:[#allocation8 + $0x38] sm:$0x3f]
    %v1114 = vpack.c.bf16 %v1102, %v1098
    %v1115 = vpack.c.bf16 %v1103, %v1099
    %v1116 = vpack.c.bf16 %v1104, %v1100
    %v1117 = vpack.c.bf16 %v1105, %v1101
    %v1118 = vld [vmem:[#allocation7] sm:$0xff]
    %v1119 = vld [vmem:[#allocation7 + $0x8] sm:$0xff]
    %v1120 = vld [vmem:[#allocation7 + $0x10] sm:$0xff]
    %v1121 = vld [vmem:[#allocation7 + $0x18] sm:$0xff]
    %v1122 = vld [vmem:[#allocation7 + $0x20] sm:$0xff]
    %v1123 = vld [vmem:[#allocation7 + $0x28] sm:$0xff]
    %v1124 = vld [vmem:[#allocation7 + $0x30] sm:$0xff]
    %v1125 = vld [vmem:[#allocation7 + $0x38] sm:$0xff]
    %v1126 = vld [vmem:[#allocation7 + $0x40] sm:$0xff]
    %v1127 = vld [vmem:[#allocation7 + $0x48] sm:$0xff]
    %v1128 = vld [vmem:[#allocation7 + $0x50] sm:$0xff]
    %v1129 = vld [vmem:[#allocation7 + $0x58] sm:$0xff]
    %v1130 = vld [vmem:[#allocation7 + $0x60] sm:$0xff]
    %v1131 = vld [vmem:[#allocation7 + $0x68] sm:$0xff]
    %v1132 = vld [vmem:[#allocation7 + $0x70] sm:$0xff]
    %v1133 = vld [vmem:[#allocation7 + $0x78] sm:$0xff]
    %v1134 = vld [vmem:[#allocation7 + $0x80] sm:$0xff]
    %v1135 = vld [vmem:[#allocation7 + $0x88] sm:$0xff]
    %v1136 = vld [vmem:[#allocation7 + $0x90] sm:$0xff]
    %v1137 = vld [vmem:[#allocation7 + $0x98] sm:$0xff]
    %v1138 = vld [vmem:[#allocation7 + $0xa0] sm:$0xff]
    %v1139 = vld [vmem:[#allocation7 + $0xa8] sm:$0xff]
    %v1140 = vld [vmem:[#allocation7 + $0xb0] sm:$0xff]
    %v1141 = vld [vmem:[#allocation7 + $0xb8] sm:$0xff]
    %v1142 = vld [vmem:[#allocation7 + $0xc0] sm:$0xff]
    %v1143 = vld [vmem:[#allocation7 + $0xc8] sm:$0xff]
    %v1144 = vld [vmem:[#allocation7 + $0xd0] sm:$0xff]
    %v1145 = vld [vmem:[#allocation7 + $0xd8] sm:$0xff]
    %v1146 = vld [vmem:[#allocation7 + $0xe0] sm:$0xff]
    %v1147 = vld [vmem:[#allocation7 + $0xe8] sm:$0xff]
    %v1148 = vld [vmem:[#allocation7 + $0xf0] sm:$0xff]
    %v1149 = vld [vmem:[#allocation7 + $0xf8] sm:$0xff]
    %v1150 = vld [vmem:[#allocation7 + $0x100] sm:$0xff]
    %v1151 = vld [vmem:[#allocation7 + $0x108] sm:$0xff]
    %v1152 = vld [vmem:[#allocation7 + $0x110] sm:$0xff]
    %v1153 = vld [vmem:[#allocation7 + $0x118] sm:$0xff]
    %v1154 = vld [vmem:[#allocation7 + $0x120] sm:$0xff]
    %v1155 = vld [vmem:[#allocation7 + $0x128] sm:$0xff]
    %v1156 = vld [vmem:[#allocation7 + $0x130] sm:$0xff]
    %v1157 = vld [vmem:[#allocation7 + $0x138] sm:$0xff]
    %v1158 = vld [vmem:[#allocation7 + $0x140] sm:$0xff]
    %v1159 = vld [vmem:[#allocation7 + $0x148] sm:$0xff]
    %v1160 = vld [vmem:[#allocation7 + $0x150] sm:$0xff]
    %v1161 = vld [vmem:[#allocation7 + $0x158] sm:$0xff]
    %v1162 = vld [vmem:[#allocation7 + $0x160] sm:$0xff]
    %v1163 = vld [vmem:[#allocation7 + $0x168] sm:$0xff]
    %v1164 = vld [vmem:[#allocation7 + $0x170] sm:$0xff]
    %v1165 = vld [vmem:[#allocation7 + $0x178] sm:$0xff]
    %v1166 = vld [vmem:[#allocation7 + $0x180] sm:$0xff]
    %v1167 = vld [vmem:[#allocation7 + $0x188] sm:$0xff]
    %v1168 = vld [vmem:[#allocation7 + $0x190] sm:$0xff]
    %v1169 = vld [vmem:[#allocation7 + $0x198] sm:$0xff]
    %v1170 = vld [vmem:[#allocation7 + $0x1a0] sm:$0xff]
    %v1171 = vld [vmem:[#allocation7 + $0x1a8] sm:$0xff]
    %v1172 = vld [vmem:[#allocation7 + $0x1b0] sm:$0xff]
    %v1173 = vld [vmem:[#allocation7 + $0x1b8] sm:$0xff]
    %v1174 = vld [vmem:[#allocation7 + $0x1c0] sm:$0xff]
    %v1175 = vld [vmem:[#allocation7 + $0x1c8] sm:$0xff]
    %v1176 = vld [vmem:[#allocation7 + $0x1d0] sm:$0xff]
    %v1177 = vld [vmem:[#allocation7 + $0x1d8] sm:$0xff]
    %v1178 = vld [vmem:[#allocation7 + $0x1e0] sm:$0xff]
    %v1179 = vld [vmem:[#allocation7 + $0x1e8] sm:$0xff]
    %v1180 = vld [vmem:[#allocation7 + $0x1f0] sm:$0xff]
    %v1181 = vld [vmem:[#allocation7 + $0x1f8] sm:$0xff]
    %v1182 = vld [vmem:[#allocation7 + $0x200] sm:$0xff]
    %v1183 = vld [vmem:[#allocation7 + $0x208] sm:$0xff]
    %v1184 = vld [vmem:[#allocation7 + $0x210] sm:$0xff]
    %v1185 = vld [vmem:[#allocation7 + $0x218] sm:$0xff]
    %v1186 = vld [vmem:[#allocation7 + $0x220] sm:$0xff]
    %v1187 = vld [vmem:[#allocation7 + $0x228] sm:$0xff]
    %v1188 = vld [vmem:[#allocation7 + $0x230] sm:$0xff]
    %v1189 = vld [vmem:[#allocation7 + $0x238] sm:$0xff]
    %v1190 = vld [vmem:[#allocation7 + $0x240] sm:$0xff]
    %v1191 = vld [vmem:[#allocation7 + $0x248] sm:$0xff]
    %v1192 = vld [vmem:[#allocation7 + $0x250] sm:$0xff]
    %v1193 = vld [vmem:[#allocation7 + $0x258] sm:$0xff]
    %v1194 = vld [vmem:[#allocation7 + $0x260] sm:$0xff]
    %v1195 = vld [vmem:[#allocation7 + $0x268] sm:$0xff]
    %v1196 = vld [vmem:[#allocation7 + $0x270] sm:$0xff]
    %v1197 = vld [vmem:[#allocation7 + $0x278] sm:$0xff]
    %v1198 = vld [vmem:[#allocation7 + $0x280] sm:$0xff]
    %v1199 = vld [vmem:[#allocation7 + $0x288] sm:$0xff]
    %v1200 = vld [vmem:[#allocation7 + $0x290] sm:$0xff]
    %v1201 = vld [vmem:[#allocation7 + $0x298] sm:$0xff]
    %v1202 = vld [vmem:[#allocation7 + $0x2a0] sm:$0xff]
    %v1203 = vld [vmem:[#allocation7 + $0x2a8] sm:$0xff]
    %v1204 = vld [vmem:[#allocation7 + $0x2b0] sm:$0xff]
    %v1205 = vld [vmem:[#allocation7 + $0x2b8] sm:$0xff]
    %v1206 = vld [vmem:[#allocation7 + $0x2c0] sm:$0xff]
    %v1207 = vld [vmem:[#allocation7 + $0x2c8] sm:$0xff]
    %v1208 = vld [vmem:[#allocation7 + $0x2d0] sm:$0xff]
    %v1209 = vld [vmem:[#allocation7 + $0x2d8] sm:$0xff]
    %v1210 = vld [vmem:[#allocation7 + $0x2e0] sm:$0xff]
    %v1211 = vld [vmem:[#allocation7 + $0x2e8] sm:$0xff]
    %v1212 = vld [vmem:[#allocation7 + $0x2f0] sm:$0xff]
    %v1213 = vld [vmem:[#allocation7 + $0x2f8] sm:$0xff]
    %v1214 = vld [vmem:[#allocation7 + $0x300] sm:$0xff]
    %v1215 = vld [vmem:[#allocation7 + $0x308] sm:$0xff]
    %v1216 = vld [vmem:[#allocation7 + $0x310] sm:$0xff]
    %v1217 = vld [vmem:[#allocation7 + $0x318] sm:$0xff]
    %v1218 = vld [vmem:[#allocation7 + $0x320] sm:$0xff]
    %v1219 = vld [vmem:[#allocation7 + $0x328] sm:$0xff]
    %v1220 = vld [vmem:[#allocation7 + $0x330] sm:$0xff]
    %v1221 = vld [vmem:[#allocation7 + $0x338] sm:$0xff]
    %v1222 = vld [vmem:[#allocation7 + $0x340] sm:$0xff]
    %v1223 = vld [vmem:[#allocation7 + $0x348] sm:$0xff]
    %v1224 = vld [vmem:[#allocation7 + $0x350] sm:$0xff]
    %v1225 = vld [vmem:[#allocation7 + $0x358] sm:$0xff]
    %v1226 = vld [vmem:[#allocation7 + $0x360] sm:$0xff]
    %v1227 = vld [vmem:[#allocation7 + $0x368] sm:$0xff]
    %v1228 = vld [vmem:[#allocation7 + $0x370] sm:$0xff]
    %v1229 = vld [vmem:[#allocation7 + $0x378] sm:$0xff]
    %v1230 = vld [vmem:[#allocation7 + $0x380] sm:$0xff]
    %v1231 = vld [vmem:[#allocation7 + $0x388] sm:$0xff]
    %v1232 = vld [vmem:[#allocation7 + $0x390] sm:$0xff]
    %v1233 = vld [vmem:[#allocation7 + $0x398] sm:$0xff]
    %v1234 = vld [vmem:[#allocation7 + $0x3a0] sm:$0xff]
    %v1235 = vld [vmem:[#allocation7 + $0x3a8] sm:$0xff]
    %v1236 = vld [vmem:[#allocation7 + $0x3b0] sm:$0xff]
    %v1237 = vld [vmem:[#allocation7 + $0x3b8] sm:$0xff]
    %v1238 = vld [vmem:[#allocation7 + $0x3c0] sm:$0xff]
    %v1239 = vld [vmem:[#allocation7 + $0x3c8] sm:$0xff]
    %v1240 = vld [vmem:[#allocation7 + $0x3d0] sm:$0xff]
    %v1241 = vld [vmem:[#allocation7 + $0x3d8] sm:$0xff]
    %v1242 = vld [vmem:[#allocation7 + $0x3e0] sm:$0xff]
    %v1243 = vld [vmem:[#allocation7 + $0x3e8] sm:$0xff]
    %v1244 = vld [vmem:[#allocation7 + $0x3f0] sm:$0xff]
    %v1245 = vld [vmem:[#allocation7 + $0x3f8] sm:$0xff]
    %v1374 = vunpack.c.l.b16 %v1118
    %v1375 = vunpack.c.h.b16 %v1118
    %v1376 = vunpack.c.l.b16 %v1119
    %v1377 = vunpack.c.h.b16 %v1119
    %v1378 = vunpack.c.l.b16 %v1120
    %v1379 = vunpack.c.h.b16 %v1120
    %v1380 = vunpack.c.l.b16 %v1121
    %v1381 = vunpack.c.h.b16 %v1121
    %v1382 = vunpack.c.l.b16 %v1122
    %v1383 = vunpack.c.h.b16 %v1122
    %v1384 = vunpack.c.l.b16 %v1123
    %v1385 = vunpack.c.h.b16 %v1123
    %v1386 = vunpack.c.l.b16 %v1124
    %v1387 = vunpack.c.h.b16 %v1124
    %v1388 = vunpack.c.l.b16 %v1125
    %v1389 = vunpack.c.h.b16 %v1125
    %v1390 = vunpack.c.l.b16 %v1126
    %v1391 = vunpack.c.h.b16 %v1126
    %v1392 = vunpack.c.l.b16 %v1127
    %v1393 = vunpack.c.h.b16 %v1127
    %v1394 = vunpack.c.l.b16 %v1128
    %v1395 = vunpack.c.h.b16 %v1128
    %v1396 = vunpack.c.l.b16 %v1129
    %v1397 = vunpack.c.h.b16 %v1129
    %v1398 = vunpack.c.l.b16 %v1130
    %v1399 = vunpack.c.h.b16 %v1130
    %v1400 = vunpack.c.l.b16 %v1131
    %v1401 = vunpack.c.h.b16 %v1131
    %v1402 = vunpack.c.l.b16 %v1132
    %v1403 = vunpack.c.h.b16 %v1132
    %v1404 = vunpack.c.l.b16 %v1133
    %v1405 = vunpack.c.h.b16 %v1133
    %v1406 = vunpack.c.l.b16 %v1134
    %v1407 = vunpack.c.h.b16 %v1134
    %v1408 = vunpack.c.l.b16 %v1135
    %v1409 = vunpack.c.h.b16 %v1135
    %v1410 = vunpack.c.l.b16 %v1136
    %v1411 = vunpack.c.h.b16 %v1136
    %v1412 = vunpack.c.l.b16 %v1137
    %v1413 = vunpack.c.h.b16 %v1137
    %v1414 = vunpack.c.l.b16 %v1138
    %v1415 = vunpack.c.h.b16 %v1138
    %v1416 = vunpack.c.l.b16 %v1139
    %v1417 = vunpack.c.h.b16 %v1139
    %v1418 = vunpack.c.l.b16 %v1140
    %v1419 = vunpack.c.h.b16 %v1140
    %v1420 = vunpack.c.l.b16 %v1141
    %v1421 = vunpack.c.h.b16 %v1141
    %v1422 = vunpack.c.l.b16 %v1142
    %v1423 = vunpack.c.h.b16 %v1142
    %v1424 = vunpack.c.l.b16 %v1143
    %v1425 = vunpack.c.h.b16 %v1143
    %v1426 = vunpack.c.l.b16 %v1144
    %v1427 = vunpack.c.h.b16 %v1144
    %v1428 = vunpack.c.l.b16 %v1145
    %v1429 = vunpack.c.h.b16 %v1145
    %v1430 = vunpack.c.l.b16 %v1146
    %v1431 = vunpack.c.h.b16 %v1146
    %v1432 = vunpack.c.l.b16 %v1147
    %v1433 = vunpack.c.h.b16 %v1147
    %v1434 = vunpack.c.l.b16 %v1148
    %v1435 = vunpack.c.h.b16 %v1148
    %v1436 = vunpack.c.l.b16 %v1149
    %v1437 = vunpack.c.h.b16 %v1149
    %v1438 = vunpack.c.l.b16 %v1150
    %v1439 = vunpack.c.h.b16 %v1150
    %v1440 = vunpack.c.l.b16 %v1151
    %v1441 = vunpack.c.h.b16 %v1151
    %v1442 = vunpack.c.l.b16 %v1152
    %v1443 = vunpack.c.h.b16 %v1152
    %v1444 = vunpack.c.l.b16 %v1153
    %v1445 = vunpack.c.h.b16 %v1153
    %v1446 = vunpack.c.l.b16 %v1154
    %v1447 = vunpack.c.h.b16 %v1154
    %v1448 = vunpack.c.l.b16 %v1155
    %v1449 = vunpack.c.h.b16 %v1155
    %v1450 = vunpack.c.l.b16 %v1156
    %v1451 = vunpack.c.h.b16 %v1156
    %v1452 = vunpack.c.l.b16 %v1157
    %v1453 = vunpack.c.h.b16 %v1157
    %v1454 = vunpack.c.l.b16 %v1158
    %v1455 = vunpack.c.h.b16 %v1158
    %v1456 = vunpack.c.l.b16 %v1159
    %v1457 = vunpack.c.h.b16 %v1159
    %v1458 = vunpack.c.l.b16 %v1160
    %v1459 = vunpack.c.h.b16 %v1160
    %v1460 = vunpack.c.l.b16 %v1161
    %v1461 = vunpack.c.h.b16 %v1161
    %v1462 = vunpack.c.l.b16 %v1162
    %v1463 = vunpack.c.h.b16 %v1162
    %v1464 = vunpack.c.l.b16 %v1163
    %v1465 = vunpack.c.h.b16 %v1163
    %v1466 = vunpack.c.l.b16 %v1164
    %v1467 = vunpack.c.h.b16 %v1164
    %v1468 = vunpack.c.l.b16 %v1165
    %v1469 = vunpack.c.h.b16 %v1165
    %v1470 = vunpack.c.l.b16 %v1166
    %v1471 = vunpack.c.h.b16 %v1166
    %v1472 = vunpack.c.l.b16 %v1167
    %v1473 = vunpack.c.h.b16 %v1167
    %v1474 = vunpack.c.l.b16 %v1168
    %v1475 = vunpack.c.h.b16 %v1168
    %v1476 = vunpack.c.l.b16 %v1169
    %v1477 = vunpack.c.h.b16 %v1169
    %v1478 = vunpack.c.l.b16 %v1170
    %v1479 = vunpack.c.h.b16 %v1170
    %v1480 = vunpack.c.l.b16 %v1171
    %v1481 = vunpack.c.h.b16 %v1171
    %v1482 = vunpack.c.l.b16 %v1172
    %v1483 = vunpack.c.h.b16 %v1172
    %v1484 = vunpack.c.l.b16 %v1173
    %v1485 = vunpack.c.h.b16 %v1173
    %v1486 = vunpack.c.l.b16 %v1174
    %v1487 = vunpack.c.h.b16 %v1174
    %v1488 = vunpack.c.l.b16 %v1175
    %v1489 = vunpack.c.h.b16 %v1175
    %v1490 = vunpack.c.l.b16 %v1176
    %v1491 = vunpack.c.h.b16 %v1176
    %v1492 = vunpack.c.l.b16 %v1177
    %v1493 = vunpack.c.h.b16 %v1177
    %v1494 = vunpack.c.l.b16 %v1178
    %v1495 = vunpack.c.h.b16 %v1178
    %v1496 = vunpack.c.l.b16 %v1179
    %v1497 = vunpack.c.h.b16 %v1179
    %v1498 = vunpack.c.l.b16 %v1180
    %v1499 = vunpack.c.h.b16 %v1180
    %v1500 = vunpack.c.l.b16 %v1181
    %v1501 = vunpack.c.h.b16 %v1181
    %v1502 = vunpack.c.l.b16 %v1182
    %v1503 = vunpack.c.h.b16 %v1182
    %v1504 = vunpack.c.l.b16 %v1183
    %v1505 = vunpack.c.h.b16 %v1183
    %v1506 = vunpack.c.l.b16 %v1184
    %v1507 = vunpack.c.h.b16 %v1184
    %v1508 = vunpack.c.l.b16 %v1185
    %v1509 = vunpack.c.h.b16 %v1185
    %v1510 = vunpack.c.l.b16 %v1186
    %v1511 = vunpack.c.h.b16 %v1186
    %v1512 = vunpack.c.l.b16 %v1187
    %v1513 = vunpack.c.h.b16 %v1187
    %v1514 = vunpack.c.l.b16 %v1188
    %v1515 = vunpack.c.h.b16 %v1188
    %v1516 = vunpack.c.l.b16 %v1189
    %v1517 = vunpack.c.h.b16 %v1189
    %v1518 = vunpack.c.l.b16 %v1190
    %v1519 = vunpack.c.h.b16 %v1190
    %v1520 = vunpack.c.l.b16 %v1191
    %v1521 = vunpack.c.h.b16 %v1191
    %v1522 = vunpack.c.l.b16 %v1192
    %v1523 = vunpack.c.h.b16 %v1192
    %v1524 = vunpack.c.l.b16 %v1193
    %v1525 = vunpack.c.h.b16 %v1193
    %v1526 = vunpack.c.l.b16 %v1194
    %v1527 = vunpack.c.h.b16 %v1194
    %v1528 = vunpack.c.l.b16 %v1195
    %v1529 = vunpack.c.h.b16 %v1195
    %v1530 = vunpack.c.l.b16 %v1196
    %v1531 = vunpack.c.h.b16 %v1196
    %v1532 = vunpack.c.l.b16 %v1197
    %v1533 = vunpack.c.h.b16 %v1197
    %v1534 = vunpack.c.l.b16 %v1198
    %v1535 = vunpack.c.h.b16 %v1198
    %v1536 = vunpack.c.l.b16 %v1199
    %v1537 = vunpack.c.h.b16 %v1199
    %v1538 = vunpack.c.l.b16 %v1200
    %v1539 = vunpack.c.h.b16 %v1200
    %v1540 = vunpack.c.l.b16 %v1201
    %v1541 = vunpack.c.h.b16 %v1201
    %v1542 = vunpack.c.l.b16 %v1202
    %v1543 = vunpack.c.h.b16 %v1202
    %v1544 = vunpack.c.l.b16 %v1203
    %v1545 = vunpack.c.h.b16 %v1203
    %v1546 = vunpack.c.l.b16 %v1204
    %v1547 = vunpack.c.h.b16 %v1204
    %v1548 = vunpack.c.l.b16 %v1205
    %v1549 = vunpack.c.h.b16 %v1205
    %v1550 = vunpack.c.l.b16 %v1206
    %v1551 = vunpack.c.h.b16 %v1206
    %v1552 = vunpack.c.l.b16 %v1207
    %v1553 = vunpack.c.h.b16 %v1207
    %v1554 = vunpack.c.l.b16 %v1208
    %v1555 = vunpack.c.h.b16 %v1208
    %v1556 = vunpack.c.l.b16 %v1209
    %v1557 = vunpack.c.h.b16 %v1209
    %v1558 = vunpack.c.l.b16 %v1210
    %v1559 = vunpack.c.h.b16 %v1210
    %v1560 = vunpack.c.l.b16 %v1211
    %v1561 = vunpack.c.h.b16 %v1211
    %v1562 = vunpack.c.l.b16 %v1212
    %v1563 = vunpack.c.h.b16 %v1212
    %v1564 = vunpack.c.l.b16 %v1213
    %v1565 = vunpack.c.h.b16 %v1213
    %v1566 = vunpack.c.l.b16 %v1214
    %v1567 = vunpack.c.h.b16 %v1214
    %v1568 = vunpack.c.l.b16 %v1215
    %v1569 = vunpack.c.h.b16 %v1215
    %v1570 = vunpack.c.l.b16 %v1216
    %v1571 = vunpack.c.h.b16 %v1216
    %v1572 = vunpack.c.l.b16 %v1217
    %v1573 = vunpack.c.h.b16 %v1217
    %v1574 = vunpack.c.l.b16 %v1218
    %v1575 = vunpack.c.h.b16 %v1218
    %v1576 = vunpack.c.l.b16 %v1219
    %v1577 = vunpack.c.h.b16 %v1219
    %v1578 = vunpack.c.l.b16 %v1220
    %v1579 = vunpack.c.h.b16 %v1220
    %v1580 = vunpack.c.l.b16 %v1221
    %v1581 = vunpack.c.h.b16 %v1221
    %v1582 = vunpack.c.l.b16 %v1222
    %v1583 = vunpack.c.h.b16 %v1222
    %v1584 = vunpack.c.l.b16 %v1223
    %v1585 = vunpack.c.h.b16 %v1223
    %v1586 = vunpack.c.l.b16 %v1224
    %v1587 = vunpack.c.h.b16 %v1224
    %v1588 = vunpack.c.l.b16 %v1225
    %v1589 = vunpack.c.h.b16 %v1225
    %v1590 = vunpack.c.l.b16 %v1226
    %v1591 = vunpack.c.h.b16 %v1226
    %v1592 = vunpack.c.l.b16 %v1227
    %v1593 = vunpack.c.h.b16 %v1227
    %v1594 = vunpack.c.l.b16 %v1228
    %v1595 = vunpack.c.h.b16 %v1228
    %v1596 = vunpack.c.l.b16 %v1229
    %v1597 = vunpack.c.h.b16 %v1229
    %v1598 = vunpack.c.l.b16 %v1230
    %v1599 = vunpack.c.h.b16 %v1230
    %v1600 = vunpack.c.l.b16 %v1231
    %v1601 = vunpack.c.h.b16 %v1231
    %v1602 = vunpack.c.l.b16 %v1232
    %v1603 = vunpack.c.h.b16 %v1232
    %v1604 = vunpack.c.l.b16 %v1233
    %v1605 = vunpack.c.h.b16 %v1233
    %v1606 = vunpack.c.l.b16 %v1234
    %v1607 = vunpack.c.h.b16 %v1234
    %v1608 = vunpack.c.l.b16 %v1235
    %v1609 = vunpack.c.h.b16 %v1235
    %v1610 = vunpack.c.l.b16 %v1236
    %v1611 = vunpack.c.h.b16 %v1236
    %v1612 = vunpack.c.l.b16 %v1237
    %v1613 = vunpack.c.h.b16 %v1237
    %v1614 = vunpack.c.l.b16 %v1238
    %v1615 = vunpack.c.h.b16 %v1238
    %v1616 = vunpack.c.l.b16 %v1239
    %v1617 = vunpack.c.h.b16 %v1239
    %v1618 = vunpack.c.l.b16 %v1240
    %v1619 = vunpack.c.h.b16 %v1240
    %v1620 = vunpack.c.l.b16 %v1241
    %v1621 = vunpack.c.h.b16 %v1241
    %v1622 = vunpack.c.l.b16 %v1242
    %v1623 = vunpack.c.h.b16 %v1242
    %v1624 = vunpack.c.l.b16 %v1243
    %v1625 = vunpack.c.h.b16 %v1243
    %v1626 = vunpack.c.l.b16 %v1244
    %v1627 = vunpack.c.h.b16 %v1244
    %v1628 = vunpack.c.l.b16 %v1245
    %v1629 = vunpack.c.h.b16 %v1245
    %v1630 = vpack.c.b16 %v1378, %v1374
    %v1631 = vpack.c.b16 %v1379, %v1375
    %v1632 = vpack.c.b16 %v1380, %v1376
    %v1633 = vpack.c.b16 %v1381, %v1377
    %v1634 = vpack.c.b16 %v1386, %v1382
    %v1635 = vpack.c.b16 %v1387, %v1383
    %v1636 = vpack.c.b16 %v1388, %v1384
    %v1637 = vpack.c.b16 %v1389, %v1385
    %v1638 = vpack.c.b16 %v1394, %v1390
    %v1639 = vpack.c.b16 %v1395, %v1391
    %v1640 = vpack.c.b16 %v1396, %v1392
    %v1641 = vpack.c.b16 %v1397, %v1393
    %v1642 = vpack.c.b16 %v1402, %v1398
    %v1643 = vpack.c.b16 %v1403, %v1399
    %v1644 = vpack.c.b16 %v1404, %v1400
    %v1645 = vpack.c.b16 %v1405, %v1401
    %v1646 = vpack.c.b16 %v1410, %v1406
    %v1647 = vpack.c.b16 %v1411, %v1407
    %v1648 = vpack.c.b16 %v1412, %v1408
    %v1649 = vpack.c.b16 %v1413, %v1409
    %v1650 = vpack.c.b16 %v1418, %v1414
    %v1651 = vpack.c.b16 %v1419, %v1415
    %v1652 = vpack.c.b16 %v1420, %v1416
    %v1653 = vpack.c.b16 %v1421, %v1417
    %v1654 = vpack.c.b16 %v1426, %v1422
    %v1655 = vpack.c.b16 %v1427, %v1423
    %v1656 = vpack.c.b16 %v1428, %v1424
    %v1657 = vpack.c.b16 %v1429, %v1425
    %v1658 = vpack.c.b16 %v1434, %v1430
    %v1659 = vpack.c.b16 %v1435, %v1431
    %v1660 = vpack.c.b16 %v1436, %v1432
    %v1661 = vpack.c.b16 %v1437, %v1433
    %v1662 = vpack.c.b16 %v1442, %v1438
    %v1663 = vpack.c.b16 %v1443, %v1439
    %v1664 = vpack.c.b16 %v1444, %v1440
    %v1665 = vpack.c.b16 %v1445, %v1441
    %v1666 = vpack.c.b16 %v1450, %v1446
    %v1667 = vpack.c.b16 %v1451, %v1447
    %v1668 = vpack.c.b16 %v1452, %v1448
    %v1669 = vpack.c.b16 %v1453, %v1449
    %v1670 = vpack.c.b16 %v1458, %v1454
    %v1671 = vpack.c.b16 %v1459, %v1455
    %v1672 = vpack.c.b16 %v1460, %v1456
    %v1673 = vpack.c.b16 %v1461, %v1457
    %v1674 = vpack.c.b16 %v1466, %v1462
    %v1675 = vpack.c.b16 %v1467, %v1463
    %v1676 = vpack.c.b16 %v1468, %v1464
    %v1677 = vpack.c.b16 %v1469, %v1465
    %v1678 = vpack.c.b16 %v1474, %v1470
    %v1679 = vpack.c.b16 %v1475, %v1471
    %v1680 = vpack.c.b16 %v1476, %v1472
    %v1681 = vpack.c.b16 %v1477, %v1473
    %v1682 = vpack.c.b16 %v1482, %v1478
    %v1683 = vpack.c.b16 %v1483, %v1479
    %v1684 = vpack.c.b16 %v1484, %v1480
    %v1685 = vpack.c.b16 %v1485, %v1481
    %v1686 = vpack.c.b16 %v1490, %v1486
    %v1687 = vpack.c.b16 %v1491, %v1487
    %v1688 = vpack.c.b16 %v1492, %v1488
    %v1689 = vpack.c.b16 %v1493, %v1489
    %v1690 = vpack.c.b16 %v1498, %v1494
    %v1691 = vpack.c.b16 %v1499, %v1495
    %v1692 = vpack.c.b16 %v1500, %v1496
    %v1693 = vpack.c.b16 %v1501, %v1497
    %v1694 = vpack.c.b16 %v1506, %v1502
    %v1695 = vpack.c.b16 %v1507, %v1503
    %v1696 = vpack.c.b16 %v1508, %v1504
    %v1697 = vpack.c.b16 %v1509, %v1505
    %v1698 = vpack.c.b16 %v1514, %v1510
    %v1699 = vpack.c.b16 %v1515, %v1511
    %v1700 = vpack.c.b16 %v1516, %v1512
    %v1701 = vpack.c.b16 %v1517, %v1513
    %v1702 = vpack.c.b16 %v1522, %v1518
    %v1703 = vpack.c.b16 %v1523, %v1519
    %v1704 = vpack.c.b16 %v1524, %v1520
    %v1705 = vpack.c.b16 %v1525, %v1521
    %v1706 = vpack.c.b16 %v1530, %v1526
    %v1707 = vpack.c.b16 %v1531, %v1527
    %v1708 = vpack.c.b16 %v1532, %v1528
    %v1709 = vpack.c.b16 %v1533, %v1529
    %v1710 = vpack.c.b16 %v1538, %v1534
    %v1711 = vpack.c.b16 %v1539, %v1535
    %v1712 = vpack.c.b16 %v1540, %v1536
    %v1713 = vpack.c.b16 %v1541, %v1537
    %v1714 = vpack.c.b16 %v1546, %v1542
    %v1715 = vpack.c.b16 %v1547, %v1543
    %v1716 = vpack.c.b16 %v1548, %v1544
    %v1717 = vpack.c.b16 %v1549, %v1545
    %v1718 = vpack.c.b16 %v1554, %v1550
    %v1719 = vpack.c.b16 %v1555, %v1551
    %v1720 = vpack.c.b16 %v1556, %v1552
    %v1721 = vpack.c.b16 %v1557, %v1553
    %v1722 = vpack.c.b16 %v1562, %v1558
    %v1723 = vpack.c.b16 %v1563, %v1559
    %v1724 = vpack.c.b16 %v1564, %v1560
    %v1725 = vpack.c.b16 %v1565, %v1561
    %v1726 = vpack.c.b16 %v1570, %v1566
    %v1727 = vpack.c.b16 %v1571, %v1567
    %v1728 = vpack.c.b16 %v1572, %v1568
    %v1729 = vpack.c.b16 %v1573, %v1569
    %v1730 = vpack.c.b16 %v1578, %v1574
    %v1731 = vpack.c.b16 %v1579, %v1575
    %v1732 = vpack.c.b16 %v1580, %v1576
    %v1733 = vpack.c.b16 %v1581, %v1577
    %v1734 = vpack.c.b16 %v1586, %v1582
    %v1735 = vpack.c.b16 %v1587, %v1583
    %v1736 = vpack.c.b16 %v1588, %v1584
    %v1737 = vpack.c.b16 %v1589, %v1585
    %v1738 = vpack.c.b16 %v1594, %v1590
    %v1739 = vpack.c.b16 %v1595, %v1591
    %v1740 = vpack.c.b16 %v1596, %v1592
    %v1741 = vpack.c.b16 %v1597, %v1593
    %v1742 = vpack.c.b16 %v1602, %v1598
    %v1743 = vpack.c.b16 %v1603, %v1599
    %v1744 = vpack.c.b16 %v1604, %v1600
    %v1745 = vpack.c.b16 %v1605, %v1601
    %v1746 = vpack.c.b16 %v1610, %v1606
    %v1747 = vpack.c.b16 %v1611, %v1607
    %v1748 = vpack.c.b16 %v1612, %v1608
    %v1749 = vpack.c.b16 %v1613, %v1609
    %v1750 = vpack.c.b16 %v1618, %v1614
    %v1751 = vpack.c.b16 %v1619, %v1615
    %v1752 = vpack.c.b16 %v1620, %v1616
    %v1753 = vpack.c.b16 %v1621, %v1617
    %v1754 = vpack.c.b16 %v1626, %v1622
    %v1755 = vpack.c.b16 %v1627, %v1623
    %v1756 = vpack.c.b16 %v1628, %v1624
    %v1757 = vpack.c.b16 %v1629, %v1625
    %1886 = vmatprep.subr.bf16.mxu0 %v1631
    %1887 = vmatpush1.bf16.xpose.msra.mxu0 %v1630
    %1888 = vmatprep.subr.bf16.mxu0 %v1635
    %1889 = vmatpush1.bf16.xpose.msra.mxu0 %v1634
    %1890 = vmatprep.subr.bf16.mxu0 %v1639
    %1891 = vmatpush1.bf16.xpose.msra.mxu0 %v1638
    %1892 = vmatprep.subr.bf16.mxu0 %v1643
    %1893 = vmatpush1.bf16.xpose.msra.mxu0 %v1642
    %1894 = vmatprep.subr.bf16.mxu0 %v1647
    %1895 = vmatpush1.bf16.xpose.msra.mxu0 %v1646
    %1896 = vmatprep.subr.bf16.mxu0 %v1651
    %1897 = vmatpush1.bf16.xpose.msra.mxu0 %v1650
    %1898 = vmatprep.subr.bf16.mxu0 %v1655
    %1899 = vmatpush1.bf16.xpose.msra.mxu0 %v1654
    %1900 = vmatprep.subr.bf16.mxu0 %v1659
    %1901 = vmatpush1.bf16.xpose.msra.mxu0 %v1658
    %1902 = vmatprep.subr.bf16.mxu0 %v1663
    %1903 = vmatpush1.bf16.xpose.msra.mxu0 %v1662
    %1904 = vmatprep.subr.bf16.mxu0 %v1667
    %1905 = vmatpush1.bf16.xpose.msra.mxu0 %v1666
    %1906 = vmatprep.subr.bf16.mxu0 %v1671
    %1907 = vmatpush1.bf16.xpose.msra.mxu0 %v1670
    %1908 = vmatprep.subr.bf16.mxu0 %v1675
    %1909 = vmatpush1.bf16.xpose.msra.mxu0 %v1674
    %1910 = vmatprep.subr.bf16.mxu0 %v1679
    %1911 = vmatpush1.bf16.xpose.msra.mxu0 %v1678
    %1912 = vmatprep.subr.bf16.mxu0 %v1683
    %1913 = vmatpush1.bf16.xpose.msra.mxu0 %v1682
    %1914 = vmatprep.subr.bf16.mxu0 %v1687
    %1915 = vmatpush1.bf16.xpose.msra.mxu0 %v1686
    %1916 = vmatprep.subr.bf16.mxu0 %v1691
    %1917 = vmatpush1.bf16.xpose.msra.mxu0 %v1690
    %1918 = vmatprep.mubr.bf16.mxu0 %v1115
    %1919 = vmatmul.mubr.bf16.gmra.mrb[0].mxu0 %v1114
    %v1920 = vpop.f32.mrb[0].mxu0
    %v1921 = vadd.f32 0.0, %v1920
    %v1922 = vpop.f32.mrb[0].mxu0
    %v1923 = vadd.f32 0.0, %v1922
    %v1924 = vpop.f32.mrb[0].mxu0
    %v1925 = vadd.f32 0.0, %v1924
    %v1926 = vpop.f32.mrb[0].mxu0
    %v1927 = vadd.f32 0.0, %v1926
    %1928 = vdwg.mxu0
    %1929 = vmatprep.subr.bf16.mxu0 %v1633
    %1930 = vmatpush1.bf16.xpose.msra.mxu0 %v1632
    %1931 = vmatprep.subr.bf16.mxu0 %v1637
    %1932 = vmatpush1.bf16.xpose.msra.mxu0 %v1636
    %1933 = vmatprep.subr.bf16.mxu0 %v1641
    %1934 = vmatpush1.bf16.xpose.msra.mxu0 %v1640
    %1935 = vmatprep.subr.bf16.mxu0 %v1645
    %1936 = vmatpush1.bf16.xpose.msra.mxu0 %v1644
    %1937 = vmatprep.subr.bf16.mxu0 %v1649
    %1938 = vmatpush1.bf16.xpose.msra.mxu0 %v1648
    %1939 = vmatprep.subr.bf16.mxu0 %v1653
    %1940 = vmatpush1.bf16.xpose.msra.mxu0 %v1652
    %1941 = vmatprep.subr.bf16.mxu0 %v1657
    %1942 = vmatpush1.bf16.xpose.msra.mxu0 %v1656
    %1943 = vmatprep.subr.bf16.mxu0 %v1661
    %1944 = vmatpush1.bf16.xpose.msra.mxu0 %v1660
    %1945 = vmatprep.subr.bf16.mxu0 %v1665
    %1946 = vmatpush1.bf16.xpose.msra.mxu0 %v1664
    %1947 = vmatprep.subr.bf16.mxu0 %v1669
    %1948 = vmatpush1.bf16.xpose.msra.mxu0 %v1668
    %1949 = vmatprep.subr.bf16.mxu0 %v1673
    %1950 = vmatpush1.bf16.xpose.msra.mxu0 %v1672
    %1951 = vmatprep.subr.bf16.mxu0 %v1677
    %1952 = vmatpush1.bf16.xpose.msra.mxu0 %v1676
    %1953 = vmatprep.subr.bf16.mxu0 %v1681
    %1954 = vmatpush1.bf16.xpose.msra.mxu0 %v1680
    %1955 = vmatprep.subr.bf16.mxu0 %v1685
    %1956 = vmatpush1.bf16.xpose.msra.mxu0 %v1684
    %1957 = vmatprep.subr.bf16.mxu0 %v1689
    %1958 = vmatpush1.bf16.xpose.msra.mxu0 %v1688
    %1959 = vmatprep.subr.bf16.mxu0 %v1693
    %1960 = vmatpush1.bf16.xpose.msra.mxu0 %v1692
    %1961 = vmatprep.mubr.bf16.mxu0 %v1117
    %1962 = vmatmul.mubr.bf16.gmra.mrb[0].mxu0 %v1116
    %v1963 = vpop.f32.mrb[0].mxu0
    %v1964 = vadd.f32 %v1921, %v1963
    %v1965 = vpop.f32.mrb[0].mxu0
    %v1966 = vadd.f32 %v1923, %v1965
    %v1967 = vpop.f32.mrb[0].mxu0
    %v1968 = vadd.f32 %v1925, %v1967
    %v1969 = vpop.f32.mrb[0].mxu0
    %v1970 = vadd.f32 %v1927, %v1969
    %1971 = vdwg.mxu0
    %1972 = vmatprep.subr.bf16.mxu0 %v1695
    %1973 = vmatpush1.bf16.xpose.msra.mxu0 %v1694
    %1974 = vmatprep.subr.bf16.mxu0 %v1699
    %1975 = vmatpush1.bf16.xpose.msra.mxu0 %v1698
    %1976 = vmatprep.subr.bf16.mxu0 %v1703
    %1977 = vmatpush1.bf16.xpose.msra.mxu0 %v1702
    %1978 = vmatprep.subr.bf16.mxu0 %v1707
    %1979 = vmatpush1.bf16.xpose.msra.mxu0 %v1706
    %1980 = vmatprep.subr.bf16.mxu0 %v1711
    %1981 = vmatpush1.bf16.xpose.msra.mxu0 %v1710
    %1982 = vmatprep.subr.bf16.mxu0 %v1715
    %1983 = vmatpush1.bf16.xpose.msra.mxu0 %v1714
    %1984 = vmatprep.subr.bf16.mxu0 %v1719
    %1985 = vmatpush1.bf16.xpose.msra.mxu0 %v1718
    %1986 = vmatprep.subr.bf16.mxu0 %v1723
    %1987 = vmatpush1.bf16.xpose.msra.mxu0 %v1722
    %1988 = vmatprep.subr.bf16.mxu0 %v1727
    %1989 = vmatpush1.bf16.xpose.msra.mxu0 %v1726
    %1990 = vmatprep.subr.bf16.mxu0 %v1731
    %1991 = vmatpush1.bf16.xpose.msra.mxu0 %v1730
    %1992 = vmatprep.subr.bf16.mxu0 %v1735
    %1993 = vmatpush1.bf16.xpose.msra.mxu0 %v1734
    %1994 = vmatprep.subr.bf16.mxu0 %v1739
    %1995 = vmatpush1.bf16.xpose.msra.mxu0 %v1738
    %1996 = vmatprep.subr.bf16.mxu0 %v1743
    %1997 = vmatpush1.bf16.xpose.msra.mxu0 %v1742
    %1998 = vmatprep.subr.bf16.mxu0 %v1747
    %1999 = vmatpush1.bf16.xpose.msra.mxu0 %v1746
    %2000 = vmatprep.subr.bf16.mxu0 %v1751
    %2001 = vmatpush1.bf16.xpose.msra.mxu0 %v1750
    %2002 = vmatprep.subr.bf16.mxu0 %v1755
    %2003 = vmatpush1.bf16.xpose.msra.mxu0 %v1754
    %2004 = vmatprep.mubr.bf16.mxu0 %v1115
    %2005 = vmatmul.mubr.bf16.gmra.mrb[0].mxu0 %v1114
    %v2006 = vpop.f32.mrb[0].mxu0
    %v2007 = vadd.f32 0.0, %v2006
    %v2008 = vpop.f32.mrb[0].mxu0
    %v2009 = vadd.f32 0.0, %v2008
    %v2010 = vpop.f32.mrb[0].mxu0
    %v2011 = vadd.f32 0.0, %v2010
    %v2012 = vpop.f32.mrb[0].mxu0
    %v2013 = vadd.f32 0.0, %v2012
    %2014 = vdwg.mxu0
    %2015 = vmatprep.subr.bf16.mxu0 %v1697
    %2016 = vmatpush1.bf16.xpose.msra.mxu0 %v1696
    %2017 = vmatprep.subr.bf16.mxu0 %v1701
    %2018 = vmatpush1.bf16.xpose.msra.mxu0 %v1700
    %2019 = vmatprep.subr.bf16.mxu0 %v1705
    %2020 = vmatpush1.bf16.xpose.msra.mxu0 %v1704
    %2021 = vmatprep.subr.bf16.mxu0 %v1709
    %2022 = vmatpush1.bf16.xpose.msra.mxu0 %v1708
    %2023 = vmatprep.subr.bf16.mxu0 %v1713
    %2024 = vmatpush1.bf16.xpose.msra.mxu0 %v1712
    %2025 = vmatprep.subr.bf16.mxu0 %v1717
    %2026 = vmatpush1.bf16.xpose.msra.mxu0 %v1716
    %2027 = vmatprep.subr.bf16.mxu0 %v1721
    %2028 = vmatpush1.bf16.xpose.msra.mxu0 %v1720
    %2029 = vmatprep.subr.bf16.mxu0 %v1725
    %2030 = vmatpush1.bf16.xpose.msra.mxu0 %v1724
    %2031 = vmatprep.subr.bf16.mxu0 %v1729
    %2032 = vmatpush1.bf16.xpose.msra.mxu0 %v1728
    %2033 = vmatprep.subr.bf16.mxu0 %v1733
    %2034 = vmatpush1.bf16.xpose.msra.mxu0 %v1732
    %2035 = vmatprep.subr.bf16.mxu0 %v1737
    %2036 = vmatpush1.bf16.xpose.msra.mxu0 %v1736
    %2037 = vmatprep.subr.bf16.mxu0 %v1741
    %2038 = vmatpush1.bf16.xpose.msra.mxu0 %v1740
    %2039 = vmatprep.subr.bf16.mxu0 %v1745
    %2040 = vmatpush1.bf16.xpose.msra.mxu0 %v1744
    %2041 = vmatprep.subr.bf16.mxu0 %v1749
    %2042 = vmatpush1.bf16.xpose.msra.mxu0 %v1748
    %2043 = vmatprep.subr.bf16.mxu0 %v1753
    %2044 = vmatpush1.bf16.xpose.msra.mxu0 %v1752
    %2045 = vmatprep.subr.bf16.mxu0 %v1757
    %2046 = vmatpush1.bf16.xpose.msra.mxu0 %v1756
    %2047 = vmatprep.mubr.bf16.mxu0 %v1117
    %2048 = vmatmul.mubr.bf16.gmra.mrb[0].mxu0 %v1116
    %v2049 = vpop.f32.mrb[0].mxu0
    %v2050 = vadd.f32 %v2007, %v2049
    %v2051 = vpop.f32.mrb[0].mxu0
    %v2052 = vadd.f32 %v2009, %v2051
    %v2053 = vpop.f32.mrb[0].mxu0
    %v2054 = vadd.f32 %v2011, %v2053
    %v2055 = vpop.f32.mrb[0].mxu0
    %v2056 = vadd.f32 %v2013, %v2055
    %2057 = vdwg.mxu0
    %v2058 = vadd.f32 %v1106, %v1964
    %v2059 = vadd.f32 %v1107, %v1966
    %v2060 = vadd.f32 %v1108, %v2050
    %v2061 = vadd.f32 %v1109, %v2052
    %v2062 = vadd.f32 %v1110, %v1968
    %v2063 = vadd.f32 %v1111, %v1970
    %v2064 = vadd.f32 %v1112, %v2054
    %v2065 = vadd.f32 %v1113, %v2056
    %2066 = vst [vmem:[#allocation8] sm:$0xff] %v2058
    %2067 = vst [vmem:[#allocation8 + $0x8] sm:$0xff] %v2059
    %2068 = vst [vmem:[#allocation8 + $0x10] sm:$0xff] %v2060
    %2069 = vst [vmem:[#allocation8 + $0x18] sm:$0xff] %v2061
    %2070 = vst [vmem:[#allocation8 + $0x20] sm:$0x3f] %v2062
    %2071 = vst [vmem:[#allocation8 + $0x28] sm:$0x3f] %v2063
    %2072 = vst [vmem:[#allocation8 + $0x30] sm:$0x3f] %v2064
    %2073 = vst [vmem:[#allocation8 + $0x38] sm:$0x3f] %v2065
    // Predicated region
    $region38: #{tpu_custom_call.1} parent=1 // pred_check
      _
    $region39: #{tpu_custom_call.1} parent=1 // pred_check_branch
      %2075 = sbr.rel (0) target = $region41
    $region40: #{tpu_custom_call.1} parent=1 // pred_region
      %s2077 = ssub.s32 1024, 1024
      %2078 = vsyncadd [#allocation4], %s2077
      %s2079 = sshll.u32 [#allocation8], 4
      %s2080 = int_to_ptr.vmem [resolvable:$true] %s2079
      %2085 = dma.vmem_to_hbm [thread:$0]  %s2080, 1024, %s5, [#allocation4], 512, 512, 32
    $region41: #{tpu_custom_call.1} parent=1 // pred_fallthru
      _
    // Predicated region
    $region42: #{tpu_custom_call.1} parent=1 // pred_check
      _
    $region43: #{tpu_custom_call.1} parent=1 // pred_check_branch
      %2087 = sbr.rel (0) target = $region45
    $region44: #{tpu_custom_call.1} parent=1 // pred_region
      %2088 = dma.done [#allocation4], 1024
    $region45: #{tpu_custom_call.1} parent=1 // pred_fallthru
      _
    %2089 = vsyncpa [#allocation3], 1
    %2090 = vsyncpa [#allocation6], 1
    %2091 = vsyncpa [#allocation4], 1

</llo_original>
